<compile_context>
chip_gen: v5e
topology: v5e:2x2
jax: 0.10.0
libtpu: 0.0.40
codegen_flags: <defaults>
</compile_context>

<pallas_src>
import numpy as np

import jax
import jax.numpy as jnp
from jax.experimental import pallas as pl
from jax.experimental.pallas import tpu as pltpu


# ------------------------------ static shape helpers ------------------------------ #
def _conv_len(l, k=2, s=3, p=1):
    return (l + 2 * p - k) // s + 1


def _deconv_len(l, s=2, k=1):
    return (l - 1) * s + k


def _tap_select(lin, lout, tap, stride=3, pad=1):
    """(lout, lin) 0/1 matrix: row t picks input position t*stride + tap - pad.

    Positions that fall into the conv zero-padding are left as all-zero rows,
    which reproduces Conv1d padding exactly.
    """
    m = np.zeros((lout, lin), np.float32)
    for t in range(lout):
        j = t * stride + tap - pad
        if 0 <= j < lin:
            m[t, j] = 1.0
    return jnp.asarray(m)


def _zero_insert(lin, lout, stride=2):
    """(lout, lin) scatter matrix: output row t*stride gets input row t, others stay 0.

    Rows that stay zero receive bias only afterwards -- exactly ConvTranspose1d(k=1,s=2).
    """
    m = np.zeros((lout, lin), np.float32)
    for t in range(lin):
        m[t * stride, t] = 1.0
    return jnp.asarray(m)


# --------------------------------- fused kernel ----------------------------------- #
def _fused_autoencoder_kernel(
    x_ref,
    s10_ref, s11_ref, w10_ref, w11_ref, b1_ref,
    s20_ref, s21_ref, w20_ref, w21_ref, b2_ref,
    s30_ref, s31_ref, w30_ref, w31_ref, b3_ref,
    t1_ref, dw1_ref, db1_ref,
    t2_ref, dw2_ref, db2_ref,
    t3_ref, dw3_ref, db3_ref,
    o_ref,
):
    f32 = jnp.float32

    def conv(h, s0_ref, s1_ref, w0_ref, w1_ref, b_ref, relu):
        # y = S0 @ (h @ W0) + S1 @ (h @ W1) + b   (im2col-as-matmul, stays in VMEM)
        y = (
            jnp.dot(s0_ref[...],
                    jnp.dot(h, w0_ref[...], preferred_element_type=f32),
                    preferred_element_type=f32)
            + jnp.dot(s1_ref[...],
                      jnp.dot(h, w1_ref[...], preferred_element_type=f32),
                      preferred_element_type=f32)
            + b_ref[...]
        )
        return jnp.maximum(y, 0.0) if relu else y

    def deconv(h, t_ref, w_ref, b_ref, relu):
        # y = T @ (h @ W) + b ; zero-inserted rows get bias only (torch semantics).
        y = jnp.dot(t_ref[...],
                    jnp.dot(h, w_ref[...], preferred_element_type=f32),
                    preferred_element_type=f32) + b_ref[...]
        return jnp.maximum(y, 0.0) if relu else y

    h = x_ref[0]                                                   # (L0, Cin) this batch elem
    # encoder
    h = conv(h, s10_ref, s11_ref, w10_ref, w11_ref, b1_ref, relu=True)
    h = conv(h, s20_ref, s21_ref, w20_ref, w21_ref, b2_ref, relu=True)
    h = conv(h, s30_ref, s31_ref, w30_ref, w31_ref, b3_ref, relu=False)
    # decoder
    h = deconv(h, t1_ref, dw1_ref, db1_ref, relu=True)
    h = deconv(h, t2_ref, dw2_ref, db2_ref, relu=True)
    h = deconv(h, t3_ref, dw3_ref, db3_ref, relu=False)
    o_ref[0] = h


# ---------------------------------- forward pass ----------------------------------- #
def conv_autoencoder_forward(params, x_ncl):
    """x_ncl: (N, 4, L) NCL like torch.  Returns (N, 4, L_dec) NCL, float32."""
    N, c_in, L0 = x_ncl.shape
    L1 = _conv_len(L0)
    L2 = _conv_len(L1)
    L3 = _conv_len(L2)
    L4 = _deconv_len(L3)
    L5 = _deconv_len(L4)
    L6 = _deconv_len(L5)
    c_out = params["d3_w"].shape[1]

    f32 = jnp.float32
    x_nlc = jnp.transpose(x_ncl, (0, 2, 1)).astype(f32)            # NCL -> NLC (tiny, one-time)

    # Per-tap conv weights in (Cin, Cout) matmul layout; biases as (1, Cout).
    w10, w11 = params["e1_w"][:, :, 0].T.astype(f32), params["e1_w"][:, :, 1].T.astype(f32)
    w20, w21 = params["e2_w"][:, :, 0].T.astype(f32), params["e2_w"][:, :, 1].T.astype(f32)
    w30, w31 = params["e3_w"][:, :, 0].T.astype(f32), params["e3_w"][:, :, 1].T.astype(f32)
    b1 = params["e1_b"].reshape(1, -1).astype(f32)
    b2 = params["e2_b"].reshape(1, -1).astype(f32)
    b3 = params["e3_b"].reshape(1, -1).astype(f32)
    dw1 = params["d1_w"][:, :, 0].astype(f32)
    dw2 = params["d2_w"][:, :, 0].astype(f32)
    dw3 = params["d3_w"][:, :, 0].astype(f32)
    db1 = params["d1_b"].reshape(1, -1).astype(f32)
    db2 = params["d2_b"].reshape(1, -1).astype(f32)
    db3 = params["d3_b"].reshape(1, -1).astype(f32)

    # Constant selection / zero-insertion matrices (built at trace time from static shapes).
    s10, s11 = _tap_select(L0, L1, 0), _tap_select(L0, L1, 1)
    s20, s21 = _tap_select(L1, L2, 0), _tap_select(L1, L2, 1)
    s30, s31 = _tap_select(L2, L3, 0), _tap_select(L2, L3, 1)
    t1 = _zero_insert(L3, L4)
    t2 = _zero_insert(L4, L5)
    t3 = _zero_insert(L5, L6)

    shared = (s10, s11, w10, w11, b1,
              s20, s21, w20, w21, b2,
              s30, s31, w30, w31, b3,
              t1, dw1, db1,
              t2, dw2, db2,
              t3, dw3, db3)

    in_specs = [pl.BlockSpec((1, L0, c_in), lambda n: (n, 0, 0))]          # per-batch block
    in_specs += [pl.BlockSpec(a.shape, lambda n: (0, 0)) for a in shared]  # shared, resident

    y = pl.pallas_call(
        _fused_autoencoder_kernel,
        out_shape=jax.ShapeDtypeStruct((N, L6, c_out), jnp.float32),
        grid=(N,),
        in_specs=in_specs,
        out_specs=pl.BlockSpec((1, L6, c_out), lambda n: (n, 0, 0)),
        compiler_params=pltpu.CompilerParams(
            dimension_semantics=("parallel",),       # batch axis -> both TCs on v7x
            vmem_limit_bytes=32 * 1024 * 1024,       # tiny footprint; fits every generation
        ),
    )(x_nlc, *shared)

    return jnp.transpose(y, (0, 2, 1))               # NLC -> NCL


# ---------------------------------- parameters ------------------------------------- #
def _uniform(key, shape, bound):
    return jax.random.uniform(key, shape, jnp.float32, minval=-bound, maxval=bound)


def init_params(key, n_components):
    ks = jax.random.split(key, 12)

    def conv_wb(kw, kb, cout, cin, k):
        bound = 1.0 / np.sqrt(cin * k)
        return _uniform(kw, (cout, cin, k), bound), _uniform(kb, (cout,), bound)

    def deconv_wb(kw, kb, cin, cout, k):
        bound = 1.0 / np.sqrt(cin * k)
        return _uniform(kw, (cin, cout, k), bound), _uniform(kb, (cout,), bound)

    p = {}
    p["e1_w"], p["e1_b"] = conv_wb(ks[0], ks[1], 12, 4, 2)
    p["e2_w"], p["e2_b"] = conv_wb(ks[2], ks[3], 24, 12, 2)
    p["e3_w"], p["e3_b"] = conv_wb(ks[4], ks[5], n_components, 24, 2)
    p["d1_w"], p["d1_b"] = deconv_wb(ks[6], ks[7], n_components, 24, 1)
    p["d2_w"], p["d2_b"] = deconv_wb(ks[8], ks[9], 24, 12, 1)
    p["d3_w"], p["d3_b"] = deconv_wb(ks[10], ks[11], 12, 4, 1)
    return p


# -------------------------- pure-JAX reference (for checking) ----------------------- #
def _reference_forward(params, x_ncl):
    x = jnp.transpose(x_ncl, (0, 2, 1)).astype(jnp.float32)

    def conv(x, W, b, stride=3, pad=1):
        N, Lin, Cin = x.shape
        Cout, _, K = W.shape
        Lout = (Lin + 2 * pad - K) // stride + 1
        xp = jnp.pad(x, ((0, 0), (pad, pad), (0, 0)))
        cols = [xp[:, k: k + stride * (Lout - 1) + 1: stride, :] for k in range(K)]
        xcol = jnp.stack(cols, axis=2).reshape(N * Lout, K * Cin)
        wcol = jnp.transpose(W, (2, 1, 0)).reshape(K * Cin, Cout)
        return (xcol @ wcol + b).reshape(N, Lout, Cout)

    def deconv(x, W, b, stride=2):
        N, Lin, Cin = x.shape
        Cout = W.shape[1]
        Lout = (Lin - 1) * stride + 1
        y = (x.reshape(N * Lin, Cin) @ W[:, :, 0] + b).reshape(N, Lin, Cout)
        out = jnp.broadcast_to(b.astype(jnp.float32), (N, Lout, Cout))
        out = out.at[:, ::stride, :].set(y)
        return out

    h = jax.nn.relu(conv(x, params["e1_w"], params["e1_b"]))
    h = jax.nn.relu(conv(h, params["e2_w"], params["e2_b"]))
    h = conv(h, params["e3_w"], params["e3_b"])
    h = jax.nn.relu(deconv(h, params["d1_w"], params["d1_b"]))
    h = jax.nn.relu(deconv(h, params["d2_w"], params["d2_b"]))
    h = deconv(h, params["d3_w"], params["d3_b"])
    return jnp.transpose(h, (0, 2, 1))


if __name__ == "__main__":
    n_components = 8
    key = jax.random.PRNGKey(0)
    kx, kp = jax.random.split(key)

    # Input matching torch Conv1d NCL convention: (batch=2, channels=4, length=16)
    x = jax.random.normal(kx, (2, 4, 16), dtype=jnp.float32)
    params = init_params(kp, n_components)

    out = jax.jit(conv_autoencoder_forward)(params, x)
    out = jax.block_until_ready(out)

    # Expected lengths: 16 -> 6 -> 3 -> 2 (encoder), 2 -> 3 -> 5 -> 9 (decoder)
    assert out.shape == (2, 4, 9), out.shape
    assert out.dtype == jnp.float32

    ref = jax.block_until_ready(_reference_forward(params, x))
    np.testing.assert_allclose(np.asarray(out), np.asarray(ref), rtol=1e-3, atol=1e-3)

    print("KERNEL_OK")
</pallas_src>

<mosaic_0001>
module attributes {stable_mosaic.version = 11 : i64} {
  func.func @_fused_autoencoder_kernel(%arg0: i32, %arg1: memref<1x16x4xf32, #tpu.memory_space<vmem>>, %arg2: memref<6x16xf32, #tpu.memory_space<vmem>>, %arg3: memref<6x16xf32, #tpu.memory_space<vmem>>, %arg4: memref<4x12xf32, #tpu.memory_space<vmem>>, %arg5: memref<4x12xf32, #tpu.memory_space<vmem>>, %arg6: memref<1x12xf32, #tpu.memory_space<vmem>>, %arg7: memref<3x6xf32, #tpu.memory_space<vmem>>, %arg8: memref<3x6xf32, #tpu.memory_space<vmem>>, %arg9: memref<12x24xf32, #tpu.memory_space<vmem>>, %arg10: memref<12x24xf32, #tpu.memory_space<vmem>>, %arg11: memref<1x24xf32, #tpu.memory_space<vmem>>, %arg12: memref<2x3xf32, #tpu.memory_space<vmem>>, %arg13: memref<2x3xf32, #tpu.memory_space<vmem>>, %arg14: memref<24x8xf32, #tpu.memory_space<vmem>>, %arg15: memref<24x8xf32, #tpu.memory_space<vmem>>, %arg16: memref<1x8xf32, #tpu.memory_space<vmem>>, %arg17: memref<3x2xf32, #tpu.memory_space<vmem>>, %arg18: memref<8x24xf32, #tpu.memory_space<vmem>>, %arg19: memref<1x24xf32, #tpu.memory_space<vmem>>, %arg20: memref<5x3xf32, #tpu.memory_space<vmem>>, %arg21: memref<24x12xf32, #tpu.memory_space<vmem>>, %arg22: memref<1x12xf32, #tpu.memory_space<vmem>>, %arg23: memref<9x5xf32, #tpu.memory_space<vmem>>, %arg24: memref<12x4xf32, #tpu.memory_space<vmem>>, %arg25: memref<1x4xf32, #tpu.memory_space<vmem>>, %arg26: memref<1x9x4xf32, #tpu.memory_space<vmem>>) attributes {dimension_semantics = [#tpu.dimension_semantics<parallel>], iteration_bounds = array<i64: 2>, scalar_prefetch = 0 : i64, scratch_operands = 0 : i64, tpu.core_type = #tpu.core_type<tc>, window_params = [{transform_indices = @transform_0, window_bounds = array<i64: 1, 16, 4>}, {pipeline_mode = #tpu.pipeline_mode<synchronous>, transform_indices = @transform_1, window_bounds = array<i64: 6, 16>}, {pipeline_mode = #tpu.pipeline_mode<synchronous>, transform_indices = @transform_2, window_bounds = array<i64: 6, 16>}, {pipeline_mode = #tpu.pipeline_mode<synchronous>, transform_indices = @transform_3, window_bounds = array<i64: 4, 12>}, {pipeline_mode = #tpu.pipeline_mode<synchronous>, transform_indices = @transform_4, window_bounds = array<i64: 4, 12>}, {pipeline_mode = #tpu.pipeline_mode<synchronous>, transform_indices = @transform_5, window_bounds = array<i64: 1, 12>}, {pipeline_mode = #tpu.pipeline_mode<synchronous>, transform_indices = @transform_6, window_bounds = array<i64: 3, 6>}, {pipeline_mode = #tpu.pipeline_mode<synchronous>, transform_indices = @transform_7, window_bounds = array<i64: 3, 6>}, {pipeline_mode = #tpu.pipeline_mode<synchronous>, transform_indices = @transform_8, window_bounds = array<i64: 12, 24>}, {pipeline_mode = #tpu.pipeline_mode<synchronous>, transform_indices = @transform_9, window_bounds = array<i64: 12, 24>}, {pipeline_mode = #tpu.pipeline_mode<synchronous>, transform_indices = @transform_10, window_bounds = array<i64: 1, 24>}, {pipeline_mode = #tpu.pipeline_mode<synchronous>, transform_indices = @transform_11, window_bounds = array<i64: 2, 3>}, {pipeline_mode = #tpu.pipeline_mode<synchronous>, transform_indices = @transform_12, window_bounds = array<i64: 2, 3>}, {pipeline_mode = #tpu.pipeline_mode<synchronous>, transform_indices = @transform_13, window_bounds = array<i64: 24, 8>}, {pipeline_mode = #tpu.pipeline_mode<synchronous>, transform_indices = @transform_14, window_bounds = array<i64: 24, 8>}, {pipeline_mode = #tpu.pipeline_mode<synchronous>, transform_indices = @transform_15, window_bounds = array<i64: 1, 8>}, {pipeline_mode = #tpu.pipeline_mode<synchronous>, transform_indices = @transform_16, window_bounds = array<i64: 3, 2>}, {pipeline_mode = #tpu.pipeline_mode<synchronous>, transform_indices = @transform_17, window_bounds = array<i64: 8, 24>}, {pipeline_mode = #tpu.pipeline_mode<synchronous>, transform_indices = @transform_18, window_bounds = array<i64: 1, 24>}, {pipeline_mode = #tpu.pipeline_mode<synchronous>, transform_indices = @transform_19, window_bounds = array<i64: 5, 3>}, {pipeline_mode = #tpu.pipeline_mode<synchronous>, transform_indices = @transform_20, window_bounds = array<i64: 24, 12>}, {pipeline_mode = #tpu.pipeline_mode<synchronous>, transform_indices = @transform_21, window_bounds = array<i64: 1, 12>}, {pipeline_mode = #tpu.pipeline_mode<synchronous>, transform_indices = @transform_22, window_bounds = array<i64: 9, 5>}, {pipeline_mode = #tpu.pipeline_mode<synchronous>, transform_indices = @transform_23, window_bounds = array<i64: 12, 4>}, {pipeline_mode = #tpu.pipeline_mode<synchronous>, transform_indices = @transform_24, window_bounds = array<i64: 1, 4>}, {transform_indices = @transform_25, window_bounds = array<i64: 1, 9, 4>}]} {
    %c0 = arith.constant 0 : index
    %c0_0 = arith.constant 0 : index
    %c0_1 = arith.constant 0 : index
    %0 = vector.load %arg1[%c0, %c0_0, %c0_1] : memref<1x16x4xf32, #tpu.memory_space<vmem>>, vector<1x16x4xf32>
    %1 = vector.shape_cast %0 : vector<1x16x4xf32> to vector<16x4xf32>
    %c0_2 = arith.constant 0 : index
    %c0_3 = arith.constant 0 : index
    %2 = vector.load %arg2[%c0_2, %c0_3] : memref<6x16xf32, #tpu.memory_space<vmem>>, vector<6x16xf32>
    %c0_4 = arith.constant 0 : index
    %c0_5 = arith.constant 0 : index
    %3 = vector.load %arg4[%c0_4, %c0_5] : memref<4x12xf32, #tpu.memory_space<vmem>>, vector<4x12xf32>
    %cst = arith.constant dense<0.000000e+00> : vector<16x12xf32>
    %4 = tpu.matmul %1, %3, %cst {dimension_numbers = #tpu.dot_dimension_numbers<[1], [0], [0], [1], [0, 0, 1, 1], [], []>} : vector<16x4xf32>, vector<4x12xf32>, vector<16x12xf32> -> vector<16x12xf32>
    %cst_6 = arith.constant dense<0.000000e+00> : vector<6x12xf32>
    %5 = tpu.matmul %2, %4, %cst_6 {dimension_numbers = #tpu.dot_dimension_numbers<[1], [0], [0], [1], [0, 0, 1, 1], [], []>} : vector<6x16xf32>, vector<16x12xf32>, vector<6x12xf32> -> vector<6x12xf32>
    %c0_7 = arith.constant 0 : index
    %c0_8 = arith.constant 0 : index
    %6 = vector.load %arg3[%c0_7, %c0_8] : memref<6x16xf32, #tpu.memory_space<vmem>>, vector<6x16xf32>
    %c0_9 = arith.constant 0 : index
    %c0_10 = arith.constant 0 : index
    %7 = vector.load %arg5[%c0_9, %c0_10] : memref<4x12xf32, #tpu.memory_space<vmem>>, vector<4x12xf32>
    %cst_11 = arith.constant dense<0.000000e+00> : vector<16x12xf32>
    %8 = tpu.matmul %1, %7, %cst_11 {dimension_numbers = #tpu.dot_dimension_numbers<[1], [0], [0], [1], [0, 0, 1, 1], [], []>} : vector<16x4xf32>, vector<4x12xf32>, vector<16x12xf32> -> vector<16x12xf32>
    %cst_12 = arith.constant dense<0.000000e+00> : vector<6x12xf32>
    %9 = tpu.matmul %6, %8, %cst_12 {dimension_numbers = #tpu.dot_dimension_numbers<[1], [0], [0], [1], [0, 0, 1, 1], [], []>} : vector<6x16xf32>, vector<16x12xf32>, vector<6x12xf32> -> vector<6x12xf32>
    %10 = arith.addf %5, %9 : vector<6x12xf32>
    %c0_13 = arith.constant 0 : index
    %c0_14 = arith.constant 0 : index
    %11 = vector.load %arg6[%c0_13, %c0_14] : memref<1x12xf32, #tpu.memory_space<vmem>>, vector<1x12xf32>
    %12 = vector.broadcast %11 : vector<1x12xf32> to vector<6x12xf32>
    %13 = arith.addf %10, %12 : vector<6x12xf32>
    %cst_15 = arith.constant 0.000000e+00 : f32
    %14 = vector.broadcast %cst_15 : f32 to vector<6x12xf32>
    %15 = arith.maximumf %13, %14 : vector<6x12xf32>
    %c0_16 = arith.constant 0 : index
    %c0_17 = arith.constant 0 : index
    %16 = vector.load %arg7[%c0_16, %c0_17] : memref<3x6xf32, #tpu.memory_space<vmem>>, vector<3x6xf32>
    %c0_18 = arith.constant 0 : index
    %c0_19 = arith.constant 0 : index
    %17 = vector.load %arg9[%c0_18, %c0_19] : memref<12x24xf32, #tpu.memory_space<vmem>>, vector<12x24xf32>
    %cst_20 = arith.constant dense<0.000000e+00> : vector<6x24xf32>
    %18 = tpu.matmul %15, %17, %cst_20 {dimension_numbers = #tpu.dot_dimension_numbers<[1], [0], [0], [1], [0, 0, 1, 1], [], []>} : vector<6x12xf32>, vector<12x24xf32>, vector<6x24xf32> -> vector<6x24xf32>
    %cst_21 = arith.constant dense<0.000000e+00> : vector<3x24xf32>
    %19 = tpu.matmul %16, %18, %cst_21 {dimension_numbers = #tpu.dot_dimension_numbers<[1], [0], [0], [1], [0, 0, 1, 1], [], []>} : vector<3x6xf32>, vector<6x24xf32>, vector<3x24xf32> -> vector<3x24xf32>
    %c0_22 = arith.constant 0 : index
    %c0_23 = arith.constant 0 : index
    %20 = vector.load %arg8[%c0_22, %c0_23] : memref<3x6xf32, #tpu.memory_space<vmem>>, vector<3x6xf32>
    %c0_24 = arith.constant 0 : index
    %c0_25 = arith.constant 0 : index
    %21 = vector.load %arg10[%c0_24, %c0_25] : memref<12x24xf32, #tpu.memory_space<vmem>>, vector<12x24xf32>
    %cst_26 = arith.constant dense<0.000000e+00> : vector<6x24xf32>
    %22 = tpu.matmul %15, %21, %cst_26 {dimension_numbers = #tpu.dot_dimension_numbers<[1], [0], [0], [1], [0, 0, 1, 1], [], []>} : vector<6x12xf32>, vector<12x24xf32>, vector<6x24xf32> -> vector<6x24xf32>
    %cst_27 = arith.constant dense<0.000000e+00> : vector<3x24xf32>
    %23 = tpu.matmul %20, %22, %cst_27 {dimension_numbers = #tpu.dot_dimension_numbers<[1], [0], [0], [1], [0, 0, 1, 1], [], []>} : vector<3x6xf32>, vector<6x24xf32>, vector<3x24xf32> -> vector<3x24xf32>
    %24 = arith.addf %19, %23 : vector<3x24xf32>
    %c0_28 = arith.constant 0 : index
    %c0_29 = arith.constant 0 : index
    %25 = vector.load %arg11[%c0_28, %c0_29] : memref<1x24xf32, #tpu.memory_space<vmem>>, vector<1x24xf32>
    %26 = vector.broadcast %25 : vector<1x24xf32> to vector<3x24xf32>
    %27 = arith.addf %24, %26 : vector<3x24xf32>
    %cst_30 = arith.constant 0.000000e+00 : f32
    %28 = vector.broadcast %cst_30 : f32 to vector<3x24xf32>
    %29 = arith.maximumf %27, %28 : vector<3x24xf32>
    %c0_31 = arith.constant 0 : index
    %c0_32 = arith.constant 0 : index
    %30 = vector.load %arg12[%c0_31, %c0_32] : memref<2x3xf32, #tpu.memory_space<vmem>>, vector<2x3xf32>
    %c0_33 = arith.constant 0 : index
    %c0_34 = arith.constant 0 : index
    %31 = vector.load %arg14[%c0_33, %c0_34] : memref<24x8xf32, #tpu.memory_space<vmem>>, vector<24x8xf32>
    %cst_35 = arith.constant dense<0.000000e+00> : vector<3x8xf32>
    %32 = tpu.matmul %29, %31, %cst_35 {dimension_numbers = #tpu.dot_dimension_numbers<[1], [0], [0], [1], [0, 0, 1, 1], [], []>} : vector<3x24xf32>, vector<24x8xf32>, vector<3x8xf32> -> vector<3x8xf32>
    %cst_36 = arith.constant dense<0.000000e+00> : vector<2x8xf32>
    %33 = tpu.matmul %30, %32, %cst_36 {dimension_numbers = #tpu.dot_dimension_numbers<[1], [0], [0], [1], [0, 0, 1, 1], [], []>} : vector<2x3xf32>, vector<3x8xf32>, vector<2x8xf32> -> vector<2x8xf32>
    %c0_37 = arith.constant 0 : index
    %c0_38 = arith.constant 0 : index
    %34 = vector.load %arg13[%c0_37, %c0_38] : memref<2x3xf32, #tpu.memory_space<vmem>>, vector<2x3xf32>
    %c0_39 = arith.constant 0 : index
    %c0_40 = arith.constant 0 : index
    %35 = vector.load %arg15[%c0_39, %c0_40] : memref<24x8xf32, #tpu.memory_space<vmem>>, vector<24x8xf32>
    %cst_41 = arith.constant dense<0.000000e+00> : vector<3x8xf32>
    %36 = tpu.matmul %29, %35, %cst_41 {dimension_numbers = #tpu.dot_dimension_numbers<[1], [0], [0], [1], [0, 0, 1, 1], [], []>} : vector<3x24xf32>, vector<24x8xf32>, vector<3x8xf32> -> vector<3x8xf32>
    %cst_42 = arith.constant dense<0.000000e+00> : vector<2x8xf32>
    %37 = tpu.matmul %34, %36, %cst_42 {dimension_numbers = #tpu.dot_dimension_numbers<[1], [0], [0], [1], [0, 0, 1, 1], [], []>} : vector<2x3xf32>, vector<3x8xf32>, vector<2x8xf32> -> vector<2x8xf32>
    %38 = arith.addf %33, %37 : vector<2x8xf32>
    %c0_43 = arith.constant 0 : index
    %c0_44 = arith.constant 0 : index
    %39 = vector.load %arg16[%c0_43, %c0_44] : memref<1x8xf32, #tpu.memory_space<vmem>>, vector<1x8xf32>
    %40 = vector.broadcast %39 : vector<1x8xf32> to vector<2x8xf32>
    %41 = arith.addf %38, %40 : vector<2x8xf32>
    %c0_45 = arith.constant 0 : index
    %c0_46 = arith.constant 0 : index
    %42 = vector.load %arg17[%c0_45, %c0_46] : memref<3x2xf32, #tpu.memory_space<vmem>>, vector<3x2xf32>
    %c0_47 = arith.constant 0 : index
    %c0_48 = arith.constant 0 : index
    %43 = vector.load %arg18[%c0_47, %c0_48] : memref<8x24xf32, #tpu.memory_space<vmem>>, vector<8x24xf32>
    %cst_49 = arith.constant dense<0.000000e+00> : vector<2x24xf32>
    %44 = tpu.matmul %41, %43, %cst_49 {dimension_numbers = #tpu.dot_dimension_numbers<[1], [0], [0], [1], [0, 0, 1, 1], [], []>} : vector<2x8xf32>, vector<8x24xf32>, vector<2x24xf32> -> vector<2x24xf32>
    %cst_50 = arith.constant dense<0.000000e+00> : vector<3x24xf32>
    %45 = tpu.matmul %42, %44, %cst_50 {dimension_numbers = #tpu.dot_dimension_numbers<[1], [0], [0], [1], [0, 0, 1, 1], [], []>} : vector<3x2xf32>, vector<2x24xf32>, vector<3x24xf32> -> vector<3x24xf32>
    %c0_51 = arith.constant 0 : index
    %c0_52 = arith.constant 0 : index
    %46 = vector.load %arg19[%c0_51, %c0_52] : memref<1x24xf32, #tpu.memory_space<vmem>>, vector<1x24xf32>
    %47 = vector.broadcast %46 : vector<1x24xf32> to vector<3x24xf32>
    %48 = arith.addf %45, %47 : vector<3x24xf32>
    %cst_53 = arith.constant 0.000000e+00 : f32
    %49 = vector.broadcast %cst_53 : f32 to vector<3x24xf32>
    %50 = arith.maximumf %48, %49 : vector<3x24xf32>
    %c0_54 = arith.constant 0 : index
    %c0_55 = arith.constant 0 : index
    %51 = vector.load %arg20[%c0_54, %c0_55] : memref<5x3xf32, #tpu.memory_space<vmem>>, vector<5x3xf32>
    %c0_56 = arith.constant 0 : index
    %c0_57 = arith.constant 0 : index
    %52 = vector.load %arg21[%c0_56, %c0_57] : memref<24x12xf32, #tpu.memory_space<vmem>>, vector<24x12xf32>
    %cst_58 = arith.constant dense<0.000000e+00> : vector<3x12xf32>
    %53 = tpu.matmul %50, %52, %cst_58 {dimension_numbers = #tpu.dot_dimension_numbers<[1], [0], [0], [1], [0, 0, 1, 1], [], []>} : vector<3x24xf32>, vector<24x12xf32>, vector<3x12xf32> -> vector<3x12xf32>
    %cst_59 = arith.constant dense<0.000000e+00> : vector<5x12xf32>
    %54 = tpu.matmul %51, %53, %cst_59 {dimension_numbers = #tpu.dot_dimension_numbers<[1], [0], [0], [1], [0, 0, 1, 1], [], []>} : vector<5x3xf32>, vector<3x12xf32>, vector<5x12xf32> -> vector<5x12xf32>
    %c0_60 = arith.constant 0 : index
    %c0_61 = arith.constant 0 : index
    %55 = vector.load %arg22[%c0_60, %c0_61] : memref<1x12xf32, #tpu.memory_space<vmem>>, vector<1x12xf32>
    %56 = vector.broadcast %55 : vector<1x12xf32> to vector<5x12xf32>
    %57 = arith.addf %54, %56 : vector<5x12xf32>
    %cst_62 = arith.constant 0.000000e+00 : f32
    %58 = vector.broadcast %cst_62 : f32 to vector<5x12xf32>
    %59 = arith.maximumf %57, %58 : vector<5x12xf32>
    %c0_63 = arith.constant 0 : index
    %c0_64 = arith.constant 0 : index
    %60 = vector.load %arg23[%c0_63, %c0_64] : memref<9x5xf32, #tpu.memory_space<vmem>>, vector<9x5xf32>
    %c0_65 = arith.constant 0 : index
    %c0_66 = arith.constant 0 : index
    %61 = vector.load %arg24[%c0_65, %c0_66] : memref<12x4xf32, #tpu.memory_space<vmem>>, vector<12x4xf32>
    %cst_67 = arith.constant dense<0.000000e+00> : vector<5x4xf32>
    %62 = tpu.matmul %59, %61, %cst_67 {dimension_numbers = #tpu.dot_dimension_numbers<[1], [0], [0], [1], [0, 0, 1, 1], [], []>} : vector<5x12xf32>, vector<12x4xf32>, vector<5x4xf32> -> vector<5x4xf32>
    %cst_68 = arith.constant dense<0.000000e+00> : vector<9x4xf32>
    %63 = tpu.matmul %60, %62, %cst_68 {dimension_numbers = #tpu.dot_dimension_numbers<[1], [0], [0], [1], [0, 0, 1, 1], [], []>} : vector<9x5xf32>, vector<5x4xf32>, vector<9x4xf32> -> vector<9x4xf32>
    %c0_69 = arith.constant 0 : index
    %c0_70 = arith.constant 0 : index
    %64 = vector.load %arg25[%c0_69, %c0_70] : memref<1x4xf32, #tpu.memory_space<vmem>>, vector<1x4xf32>
    %65 = vector.broadcast %64 : vector<1x4xf32> to vector<9x4xf32>
    %66 = arith.addf %63, %65 : vector<9x4xf32>
    %c0_71 = arith.constant 0 : index
    %c0_72 = arith.constant 0 : index
    %c0_73 = arith.constant 0 : index
    %67 = vector.load %arg26[%c0_71, %c0_72, %c0_73] : memref<1x9x4xf32, #tpu.memory_space<vmem>>, vector<1x9x4xf32>
    %68 = vector.shape_cast %67 : vector<1x9x4xf32> to vector<9x4xf32>
    %69 = vector.shape_cast %66 : vector<9x4xf32> to vector<1x9x4xf32>
    tpu.vector_store %arg26[%c0_71, %c0_72, %c0_73], %69 {strides = array<i32>} : memref<1x9x4xf32, #tpu.memory_space<vmem>>, vector<1x9x4xf32>,
    return
  }
  func.func @transform_0(%arg0: i32) -> (i32, i32, i32) {
    %c0_i32 = arith.constant 0 : i32
    %c0_i32_0 = arith.constant 0 : i32
    %c0_i32_1 = arith.constant 0 : i32
    return %arg0, %c0_i32, %c0_i32_0 : i32, i32, i32
  }
  func.func @transform_1(%arg0: i32) -> (i32, i32) {
    %c0_i32 = arith.constant 0 : i32
    %c0_i32_0 = arith.constant 0 : i32
    %c0_i32_1 = arith.constant 0 : i32
    return %c0_i32, %c0_i32_0 : i32, i32
  }
  func.func @transform_2(%arg0: i32) -> (i32, i32) {
    %c0_i32 = arith.constant 0 : i32
    %c0_i32_0 = arith.constant 0 : i32
    %c0_i32_1 = arith.constant 0 : i32
    return %c0_i32, %c0_i32_0 : i32, i32
  }
  func.func @transform_3(%arg0: i32) -> (i32, i32) {
    %c0_i32 = arith.constant 0 : i32
    %c0_i32_0 = arith.constant 0 : i32
    %c0_i32_1 = arith.constant 0 : i32
    return %c0_i32, %c0_i32_0 : i32, i32
  }
  func.func @transform_4(%arg0: i32) -> (i32, i32) {
    %c0_i32 = arith.constant 0 : i32
    %c0_i32_0 = arith.constant 0 : i32
    %c0_i32_1 = arith.constant 0 : i32
    return %c0_i32, %c0_i32_0 : i32, i32
  }
  func.func @transform_5(%arg0: i32) -> (i32, i32) {
    %c0_i32 = arith.constant 0 : i32
    %c0_i32_0 = arith.constant 0 : i32
    %c0_i32_1 = arith.constant 0 : i32
    return %c0_i32, %c0_i32_0 : i32, i32
  }
  func.func @transform_6(%arg0: i32) -> (i32, i32) {
    %c0_i32 = arith.constant 0 : i32
    %c0_i32_0 = arith.constant 0 : i32
    %c0_i32_1 = arith.constant 0 : i32
    return %c0_i32, %c0_i32_0 : i32, i32
  }
  func.func @transform_7(%arg0: i32) -> (i32, i32) {
    %c0_i32 = arith.constant 0 : i32
    %c0_i32_0 = arith.constant 0 : i32
    %c0_i32_1 = arith.constant 0 : i32
    return %c0_i32, %c0_i32_0 : i32, i32
  }
  func.func @transform_8(%arg0: i32) -> (i32, i32) {
    %c0_i32 = arith.constant 0 : i32
    %c0_i32_0 = arith.constant 0 : i32
    %c0_i32_1 = arith.constant 0 : i32
    return %c0_i32, %c0_i32_0 : i32, i32
  }
  func.func @transform_9(%arg0: i32) -> (i32, i32) {
    %c0_i32 = arith.constant 0 : i32
    %c0_i32_0 = arith.constant 0 : i32
    %c0_i32_1 = arith.constant 0 : i32
    return %c0_i32, %c0_i32_0 : i32, i32
  }
  func.func @transform_10(%arg0: i32) -> (i32, i32) {
    %c0_i32 = arith.constant 0 : i32
    %c0_i32_0 = arith.constant 0 : i32
    %c0_i32_1 = arith.constant 0 : i32
    return %c0_i32, %c0_i32_0 : i32, i32
  }
  func.func @transform_11(%arg0: i32) -> (i32, i32) {
    %c0_i32 = arith.constant 0 : i32
    %c0_i32_0 = arith.constant 0 : i32
    %c0_i32_1 = arith.constant 0 : i32
    return %c0_i32, %c0_i32_0 : i32, i32
  }
  func.func @transform_12(%arg0: i32) -> (i32, i32) {
    %c0_i32 = arith.constant 0 : i32
    %c0_i32_0 = arith.constant 0 : i32
    %c0_i32_1 = arith.constant 0 : i32
    return %c0_i32, %c0_i32_0 : i32, i32
  }
  func.func @transform_13(%arg0: i32) -> (i32, i32) {
    %c0_i32 = arith.constant 0 : i32
    %c0_i32_0 = arith.constant 0 : i32
    %c0_i32_1 = arith.constant 0 : i32
    return %c0_i32, %c0_i32_0 : i32, i32
  }
  func.func @transform_14(%arg0: i32) -> (i32, i32) {
    %c0_i32 = arith.constant 0 : i32
    %c0_i32_0 = arith.constant 0 : i32
    %c0_i32_1 = arith.constant 0 : i32
    return %c0_i32, %c0_i32_0 : i32, i32
  }
  func.func @transform_15(%arg0: i32) -> (i32, i32) {
    %c0_i32 = arith.constant 0 : i32
    %c0_i32_0 = arith.constant 0 : i32
    %c0_i32_1 = arith.constant 0 : i32
    return %c0_i32, %c0_i32_0 : i32, i32
  }
  func.func @transform_16(%arg0: i32) -> (i32, i32) {
    %c0_i32 = arith.constant 0 : i32
    %c0_i32_0 = arith.constant 0 : i32
    %c0_i32_1 = arith.constant 0 : i32
    return %c0_i32, %c0_i32_0 : i32, i32
  }
  func.func @transform_17(%arg0: i32) -> (i32, i32) {
    %c0_i32 = arith.constant 0 : i32
    %c0_i32_0 = arith.constant 0 : i32
    %c0_i32_1 = arith.constant 0 : i32
    return %c0_i32, %c0_i32_0 : i32, i32
  }
  func.func @transform_18(%arg0: i32) -> (i32, i32) {
    %c0_i32 = arith.constant 0 : i32
    %c0_i32_0 = arith.constant 0 : i32
    %c0_i32_1 = arith.constant 0 : i32
    return %c0_i32, %c0_i32_0 : i32, i32
  }
  func.func @transform_19(%arg0: i32) -> (i32, i32) {
    %c0_i32 = arith.constant 0 : i32
    %c0_i32_0 = arith.constant 0 : i32
    %c0_i32_1 = arith.constant 0 : i32
    return %c0_i32, %c0_i32_0 : i32, i32
  }
  func.func @transform_20(%arg0: i32) -> (i32, i32) {
    %c0_i32 = arith.constant 0 : i32
    %c0_i32_0 = arith.constant 0 : i32
    %c0_i32_1 = arith.constant 0 : i32
    return %c0_i32, %c0_i32_0 : i32, i32
  }
  func.func @transform_21(%arg0: i32) -> (i32, i32) {
    %c0_i32 = arith.constant 0 : i32
    %c0_i32_0 = arith.constant 0 : i32
    %c0_i32_1 = arith.constant 0 : i32
    return %c0_i32, %c0_i32_0 : i32, i32
  }
  func.func @transform_22(%arg0: i32) -> (i32, i32) {
    %c0_i32 = arith.constant 0 : i32
    %c0_i32_0 = arith.constant 0 : i32
    %c0_i32_1 = arith.constant 0 : i32
    return %c0_i32, %c0_i32_0 : i32, i32
  }
  func.func @transform_23(%arg0: i32) -> (i32, i32) {
    %c0_i32 = arith.constant 0 : i32
    %c0_i32_0 = arith.constant 0 : i32
    %c0_i32_1 = arith.constant 0 : i32
    return %c0_i32, %c0_i32_0 : i32, i32
  }
  func.func @transform_24(%arg0: i32) -> (i32, i32) {
    %c0_i32 = arith.constant 0 : i32
    %c0_i32_0 = arith.constant 0 : i32
    %c0_i32_1 = arith.constant 0 : i32
    return %c0_i32, %c0_i32_0 : i32, i32
  }
  func.func @transform_25(%arg0: i32) -> (i32, i32, i32) {
    %c0_i32 = arith.constant 0 : i32
    %c0_i32_0 = arith.constant 0 : i32
    %c0_i32_1 = arith.constant 0 : i32
    return %arg0, %c0_i32, %c0_i32_0 : i32, i32, i32
  }
}

</mosaic_0001>

<llo_original>
// kernel: conv_autoencoder_forward.1
$region0: #{conv_autoencoder_forward.1}
  #allocation0 [shape = 'u32[]', space=smem, size = 0x4, offset = 0x4, fixed_abs, tag = 'smem constant byte address 0x4 - core index']
  #allocation1 [shape = 'u32[72,128]{1,0:T(1,128)}', space=vmem, size = 0x9000, scoped, tag = 'internal scratch']
  %s0 = inlined_call_operand.vmem [shape: f32[2,16,4], index: 0, kind: input, shape index: {}]
  %s1 = inlined_call_operand.vmem [shape: f32[6,16], index: 1, kind: input, shape index: {}]
  %s2 = inlined_call_operand.vmem [shape: f32[6,16], index: 2, kind: input, shape index: {}]
  %s3 = inlined_call_operand.vmem [shape: f32[4,12], index: 3, kind: input, shape index: {}]
  %s4 = inlined_call_operand.vmem [shape: f32[4,12], index: 4, kind: input, shape index: {}]
  %s5 = inlined_call_operand.vmem [shape: f32[1,12], index: 5, kind: input, shape index: {}]
  %s6 = inlined_call_operand.vmem [shape: f32[3,6], index: 6, kind: input, shape index: {}]
  %s7 = inlined_call_operand.vmem [shape: f32[3,6], index: 7, kind: input, shape index: {}]
  %s8 = inlined_call_operand.vmem [shape: f32[12,24], index: 8, kind: input, shape index: {}]
  %s9 = inlined_call_operand.vmem [shape: f32[12,24], index: 9, kind: input, shape index: {}]
  %s10 = inlined_call_operand.vmem [shape: f32[1,24], index: 10, kind: input, shape index: {}]
  %s11 = inlined_call_operand.vmem [shape: f32[2,3], index: 11, kind: input, shape index: {}]
  %s12 = inlined_call_operand.vmem [shape: f32[2,3], index: 12, kind: input, shape index: {}]
  %s13 = inlined_call_operand.vmem [shape: f32[24,8], index: 13, kind: input, shape index: {}]
  %s14 = inlined_call_operand.vmem [shape: f32[24,8], index: 14, kind: input, shape index: {}]
  %s15 = inlined_call_operand.vmem [shape: f32[1,8], index: 15, kind: input, shape index: {}]
  %s16 = inlined_call_operand.vmem [shape: f32[3,2], index: 16, kind: input, shape index: {}]
  %s17 = inlined_call_operand.vmem [shape: f32[8,24], index: 17, kind: input, shape index: {}]
  %s18 = inlined_call_operand.vmem [shape: f32[1,24], index: 18, kind: input, shape index: {}]
  %s19 = inlined_call_operand.vmem [shape: f32[5,3], index: 19, kind: input, shape index: {}]
  %s20 = inlined_call_operand.vmem [shape: f32[24,12], index: 20, kind: input, shape index: {}]
  %s21 = inlined_call_operand.vmem [shape: f32[1,12], index: 21, kind: input, shape index: {}]
  %s22 = inlined_call_operand.vmem [shape: f32[9,5], index: 22, kind: input, shape index: {}]
  %s23 = inlined_call_operand.vmem [shape: f32[12,4], index: 23, kind: input, shape index: {}]
  %s24 = inlined_call_operand.vmem [shape: f32[1,4], index: 24, kind: input, shape index: {}]
  %s25 = inlined_call_operand.vmem [shape: f32[2,9,4], index: 25, kind: output, shape index: {}]
  %s26 = sld [smem:[#allocation0]]
  $region133: #{conv_autoencoder_forward.1} parent=0
    _
  %s28 = ssub.s32 1, %s26
  %s29 = scalar_select 0, %s28, %s26
  loop: start=0, step=1, limit=4
  $region2: #{conv_autoencoder_forward.1} parent=0 // loop_pre_header
    _
  $region3: #{conv_autoencoder_forward.1} parent=0 // loop_header
    %s31 = sphi 0, %s35
    %p32 = scmp.ge.s32.totalorder %s31, 4
    %s41 = sphi 0, %s43
    %s44 = sphi 0, %s41
    %s45 = sphi 0, %s44
    %s61 = sphi 0, %s45
    %s65 = sphi 0, %s65
    %s67 = sphi 0, %s65
    %s68 = sphi 0, %s67
    %s82 = sphi 0, %s68
    %s86 = sphi 0, %s86
    %s88 = sphi 0, %s86
    %s89 = sphi 0, %s88
    %s103 = sphi 0, %s89
    %s107 = sphi 0, %s107
    %s109 = sphi 0, %s107
    %s110 = sphi 0, %s109
    %s124 = sphi 0, %s110
    %s128 = sphi 0, %s128
    %s130 = sphi 0, %s128
    %s131 = sphi 0, %s130
    %s145 = sphi 0, %s131
    %s149 = sphi 0, %s149
    %s151 = sphi 0, %s149
    %s152 = sphi 0, %s151
    %s166 = sphi 0, %s152
    %s170 = sphi 0, %s170
    %s172 = sphi 0, %s170
    %s173 = sphi 0, %s172
    %s187 = sphi 0, %s173
    %s191 = sphi 0, %s191
    %s193 = sphi 0, %s191
    %s194 = sphi 0, %s193
    %s208 = sphi 0, %s194
    %s212 = sphi 0, %s212
    %s214 = sphi 0, %s212
    %s215 = sphi 0, %s214
    %s229 = sphi 0, %s215
    %s233 = sphi 0, %s233
    %s235 = sphi 0, %s233
    %s236 = sphi 0, %s235
    %s250 = sphi 0, %s236
    %s254 = sphi 0, %s254
    %s256 = sphi 0, %s254
    %s257 = sphi 0, %s256
    %s271 = sphi 0, %s257
    %s275 = sphi 0, %s275
    %s277 = sphi 0, %s275
    %s278 = sphi 0, %s277
    %s292 = sphi 0, %s278
    %s296 = sphi 0, %s296
    %s298 = sphi 0, %s296
    %s299 = sphi 0, %s298
    %s313 = sphi 0, %s299
    %s317 = sphi 0, %s317
    %s319 = sphi 0, %s317
    %s320 = sphi 0, %s319
    %s334 = sphi 0, %s320
    %s338 = sphi 0, %s338
    %s340 = sphi 0, %s338
    %s341 = sphi 0, %s340
    %s355 = sphi 0, %s341
    %s359 = sphi 0, %s359
    %s361 = sphi 0, %s359
    %s362 = sphi 0, %s361
    %s376 = sphi 0, %s362
    %s380 = sphi 0, %s380
    %s382 = sphi 0, %s380
    %s383 = sphi 0, %s382
    %s397 = sphi 0, %s383
    %s401 = sphi 0, %s401
    %s403 = sphi 0, %s401
    %s404 = sphi 0, %s403
    %s418 = sphi 0, %s404
    %s422 = sphi 0, %s422
    %s424 = sphi 0, %s422
    %s425 = sphi 0, %s424
    %s439 = sphi 0, %s425
    %s443 = sphi 0, %s443
    %s445 = sphi 0, %s443
    %s446 = sphi 0, %s445
    %s460 = sphi 0, %s446
    %s464 = sphi 0, %s464
    %s466 = sphi 0, %s464
    %s467 = sphi 0, %s466
    %s481 = sphi 0, %s467
    %s485 = sphi 0, %s485
    %s487 = sphi 0, %s485
    %s488 = sphi 0, %s487
    %s502 = sphi 0, %s488
    %s506 = sphi 0, %s506
    %s508 = sphi 0, %s506
    %s509 = sphi 0, %s508
    %s523 = sphi 0, %s509
    %s527 = sphi 0, %s527
    %s529 = sphi 0, %s527
    %s530 = sphi 0, %s529
    %s544 = sphi 0, %s530
    %s548 = sphi 0, %s548
    %s550 = sphi 0, %s548
    %s551 = sphi 0, %s550
    %s565 = sphi 0, %s551
    %s571 = sphi 0, %s573
    %s574 = sphi 0, %s571
    %s575 = sphi 0, %s574
    %s591 = sphi 0, %s575
  $region4: #{conv_autoencoder_forward.1} parent=0 // loop_header_branch
    %34 = sbr.rel (%p32) target = $region8
  $region5: #{conv_autoencoder_forward.1} parent=0 // loop_body
    %s36 = ssub.s32 %s31, 1
    %s37 = ssub.s32 %s31, 2
    %s38 = sadd.s32 %s31, 1
    %s39 = ssub.s32 %s31, %s38
    %p40 = scmp.eq.s32.totalorder %s39, 0
    %s42 = sadd.s32 %s41, 1
    %s43 = scalar_select %p40, %s41, %s42
    %p46 = pneg %p40
    %p47 = scmp.eq.s32.totalorder %s31, 1
    %p48 = por %p46, %p47
    %p49 = scmp.ne.s32.totalorder %s41, %s44
    %p50 = scmp.eq.s32.totalorder %s31, 0
    %p51 = por %p49, %p50
    %p52 = scmp.ne.s32.totalorder %s41, %s44
    %p53 = scmp.eq.s32.totalorder %s36, 1
    %p54 = por %p52, %p53
    %p55 = scmp.ne.s32.totalorder %s44, %s45
    %p56 = scmp.eq.s32.totalorder %s36, 0
    %p57 = por %p55, %p56
    %p58 = scmp.ne.s32.totalorder %s44, %s45
    %p59 = scmp.eq.s32.totalorder %s37, 1
    %p60 = por %p58, %p59
    %p62 = scmp.ne.s32.totalorder %s45, %s61
    %p63 = scmp.eq.s32.totalorder %s37, 0
    %p64 = por %p62, %p63
    %s66 = sadd.s32 %s65, 1
    %p69 = scmp.eq.s32.totalorder %s31, 1
    %p70 = scmp.ne.s32.totalorder %s65, %s67
    %p71 = scmp.eq.s32.totalorder %s31, 0
    %p72 = por %p70, %p71
    %p73 = scmp.ne.s32.totalorder %s65, %s67
    %p74 = scmp.eq.s32.totalorder %s36, 1
    %p75 = por %p73, %p74
    %p76 = scmp.ne.s32.totalorder %s67, %s68
    %p77 = scmp.eq.s32.totalorder %s36, 0
    %p78 = por %p76, %p77
    %p79 = scmp.ne.s32.totalorder %s67, %s68
    %p80 = scmp.eq.s32.totalorder %s37, 1
    %p81 = por %p79, %p80
    %p83 = scmp.ne.s32.totalorder %s68, %s82
    %p84 = scmp.eq.s32.totalorder %s37, 0
    %p85 = por %p83, %p84
    %s87 = sadd.s32 %s86, 1
    %p90 = scmp.eq.s32.totalorder %s31, 1
    %p91 = scmp.ne.s32.totalorder %s86, %s88
    %p92 = scmp.eq.s32.totalorder %s31, 0
    %p93 = por %p91, %p92
    %p94 = scmp.ne.s32.totalorder %s86, %s88
    %p95 = scmp.eq.s32.totalorder %s36, 1
    %p96 = por %p94, %p95
    %p97 = scmp.ne.s32.totalorder %s88, %s89
    %p98 = scmp.eq.s32.totalorder %s36, 0
    %p99 = por %p97, %p98
    %p100 = scmp.ne.s32.totalorder %s88, %s89
    %p101 = scmp.eq.s32.totalorder %s37, 1
    %p102 = por %p100, %p101
    %p104 = scmp.ne.s32.totalorder %s89, %s103
    %p105 = scmp.eq.s32.totalorder %s37, 0
    %p106 = por %p104, %p105
    %s108 = sadd.s32 %s107, 1
    %p111 = scmp.eq.s32.totalorder %s31, 1
    %p112 = scmp.ne.s32.totalorder %s107, %s109
    %p113 = scmp.eq.s32.totalorder %s31, 0
    %p114 = por %p112, %p113
    %p115 = scmp.ne.s32.totalorder %s107, %s109
    %p116 = scmp.eq.s32.totalorder %s36, 1
    %p117 = por %p115, %p116
    %p118 = scmp.ne.s32.totalorder %s109, %s110
    %p119 = scmp.eq.s32.totalorder %s36, 0
    %p120 = por %p118, %p119
    %p121 = scmp.ne.s32.totalorder %s109, %s110
    %p122 = scmp.eq.s32.totalorder %s37, 1
    %p123 = por %p121, %p122
    %p125 = scmp.ne.s32.totalorder %s110, %s124
    %p126 = scmp.eq.s32.totalorder %s37, 0
    %p127 = por %p125, %p126
    %s129 = sadd.s32 %s128, 1
    %p132 = scmp.eq.s32.totalorder %s31, 1
    %p133 = scmp.ne.s32.totalorder %s128, %s130
    %p134 = scmp.eq.s32.totalorder %s31, 0
    %p135 = por %p133, %p134
    %p136 = scmp.ne.s32.totalorder %s128, %s130
    %p137 = scmp.eq.s32.totalorder %s36, 1
    %p138 = por %p136, %p137
    %p139 = scmp.ne.s32.totalorder %s130, %s131
    %p140 = scmp.eq.s32.totalorder %s36, 0
    %p141 = por %p139, %p140
    %p142 = scmp.ne.s32.totalorder %s130, %s131
    %p143 = scmp.eq.s32.totalorder %s37, 1
    %p144 = por %p142, %p143
    %p146 = scmp.ne.s32.totalorder %s131, %s145
    %p147 = scmp.eq.s32.totalorder %s37, 0
    %p148 = por %p146, %p147
    %s150 = sadd.s32 %s149, 1
    %p153 = scmp.eq.s32.totalorder %s31, 1
    %p154 = scmp.ne.s32.totalorder %s149, %s151
    %p155 = scmp.eq.s32.totalorder %s31, 0
    %p156 = por %p154, %p155
    %p157 = scmp.ne.s32.totalorder %s149, %s151
    %p158 = scmp.eq.s32.totalorder %s36, 1
    %p159 = por %p157, %p158
    %p160 = scmp.ne.s32.totalorder %s151, %s152
    %p161 = scmp.eq.s32.totalorder %s36, 0
    %p162 = por %p160, %p161
    %p163 = scmp.ne.s32.totalorder %s151, %s152
    %p164 = scmp.eq.s32.totalorder %s37, 1
    %p165 = por %p163, %p164
    %p167 = scmp.ne.s32.totalorder %s152, %s166
    %p168 = scmp.eq.s32.totalorder %s37, 0
    %p169 = por %p167, %p168
    %s171 = sadd.s32 %s170, 1
    %p174 = scmp.eq.s32.totalorder %s31, 1
    %p175 = scmp.ne.s32.totalorder %s170, %s172
    %p176 = scmp.eq.s32.totalorder %s31, 0
    %p177 = por %p175, %p176
    %p178 = scmp.ne.s32.totalorder %s170, %s172
    %p179 = scmp.eq.s32.totalorder %s36, 1
    %p180 = por %p178, %p179
    %p181 = scmp.ne.s32.totalorder %s172, %s173
    %p182 = scmp.eq.s32.totalorder %s36, 0
    %p183 = por %p181, %p182
    %p184 = scmp.ne.s32.totalorder %s172, %s173
    %p185 = scmp.eq.s32.totalorder %s37, 1
    %p186 = por %p184, %p185
    %p188 = scmp.ne.s32.totalorder %s173, %s187
    %p189 = scmp.eq.s32.totalorder %s37, 0
    %p190 = por %p188, %p189
    %s192 = sadd.s32 %s191, 1
    %p195 = scmp.eq.s32.totalorder %s31, 1
    %p196 = scmp.ne.s32.totalorder %s191, %s193
    %p197 = scmp.eq.s32.totalorder %s31, 0
    %p198 = por %p196, %p197
    %p199 = scmp.ne.s32.totalorder %s191, %s193
    %p200 = scmp.eq.s32.totalorder %s36, 1
    %p201 = por %p199, %p200
    %p202 = scmp.ne.s32.totalorder %s193, %s194
    %p203 = scmp.eq.s32.totalorder %s36, 0
    %p204 = por %p202, %p203
    %p205 = scmp.ne.s32.totalorder %s193, %s194
    %p206 = scmp.eq.s32.totalorder %s37, 1
    %p207 = por %p205, %p206
    %p209 = scmp.ne.s32.totalorder %s194, %s208
    %p210 = scmp.eq.s32.totalorder %s37, 0
    %p211 = por %p209, %p210
    %s213 = sadd.s32 %s212, 1
    %p216 = scmp.eq.s32.totalorder %s31, 1
    %p217 = scmp.ne.s32.totalorder %s212, %s214
    %p218 = scmp.eq.s32.totalorder %s31, 0
    %p219 = por %p217, %p218
    %p220 = scmp.ne.s32.totalorder %s212, %s214
    %p221 = scmp.eq.s32.totalorder %s36, 1
    %p222 = por %p220, %p221
    %p223 = scmp.ne.s32.totalorder %s214, %s215
    %p224 = scmp.eq.s32.totalorder %s36, 0
    %p225 = por %p223, %p224
    %p226 = scmp.ne.s32.totalorder %s214, %s215
    %p227 = scmp.eq.s32.totalorder %s37, 1
    %p228 = por %p226, %p227
    %p230 = scmp.ne.s32.totalorder %s215, %s229
    %p231 = scmp.eq.s32.totalorder %s37, 0
    %p232 = por %p230, %p231
    %s234 = sadd.s32 %s233, 1
    %p237 = scmp.eq.s32.totalorder %s31, 1
    %p238 = scmp.ne.s32.totalorder %s233, %s235
    %p239 = scmp.eq.s32.totalorder %s31, 0
    %p240 = por %p238, %p239
    %p241 = scmp.ne.s32.totalorder %s233, %s235
    %p242 = scmp.eq.s32.totalorder %s36, 1
    %p243 = por %p241, %p242
    %p244 = scmp.ne.s32.totalorder %s235, %s236
    %p245 = scmp.eq.s32.totalorder %s36, 0
    %p246 = por %p244, %p245
    %p247 = scmp.ne.s32.totalorder %s235, %s236
    %p248 = scmp.eq.s32.totalorder %s37, 1
    %p249 = por %p247, %p248
    %p251 = scmp.ne.s32.totalorder %s236, %s250
    %p252 = scmp.eq.s32.totalorder %s37, 0
    %p253 = por %p251, %p252
    %s255 = sadd.s32 %s254, 1
    %p258 = scmp.eq.s32.totalorder %s31, 1
    %p259 = scmp.ne.s32.totalorder %s254, %s256
    %p260 = scmp.eq.s32.totalorder %s31, 0
    %p261 = por %p259, %p260
    %p262 = scmp.ne.s32.totalorder %s254, %s256
    %p263 = scmp.eq.s32.totalorder %s36, 1
    %p264 = por %p262, %p263
    %p265 = scmp.ne.s32.totalorder %s256, %s257
    %p266 = scmp.eq.s32.totalorder %s36, 0
    %p267 = por %p265, %p266
    %p268 = scmp.ne.s32.totalorder %s256, %s257
    %p269 = scmp.eq.s32.totalorder %s37, 1
    %p270 = por %p268, %p269
    %p272 = scmp.ne.s32.totalorder %s257, %s271
    %p273 = scmp.eq.s32.totalorder %s37, 0
    %p274 = por %p272, %p273
    %s276 = sadd.s32 %s275, 1
    %p279 = scmp.eq.s32.totalorder %s31, 1
    %p280 = scmp.ne.s32.totalorder %s275, %s277
    %p281 = scmp.eq.s32.totalorder %s31, 0
    %p282 = por %p280, %p281
    %p283 = scmp.ne.s32.totalorder %s275, %s277
    %p284 = scmp.eq.s32.totalorder %s36, 1
    %p285 = por %p283, %p284
    %p286 = scmp.ne.s32.totalorder %s277, %s278
    %p287 = scmp.eq.s32.totalorder %s36, 0
    %p288 = por %p286, %p287
    %p289 = scmp.ne.s32.totalorder %s277, %s278
    %p290 = scmp.eq.s32.totalorder %s37, 1
    %p291 = por %p289, %p290
    %p293 = scmp.ne.s32.totalorder %s278, %s292
    %p294 = scmp.eq.s32.totalorder %s37, 0
    %p295 = por %p293, %p294
    %s297 = sadd.s32 %s296, 1
    %p300 = scmp.eq.s32.totalorder %s31, 1
    %p301 = scmp.ne.s32.totalorder %s296, %s298
    %p302 = scmp.eq.s32.totalorder %s31, 0
    %p303 = por %p301, %p302
    %p304 = scmp.ne.s32.totalorder %s296, %s298
    %p305 = scmp.eq.s32.totalorder %s36, 1
    %p306 = por %p304, %p305
    %p307 = scmp.ne.s32.totalorder %s298, %s299
    %p308 = scmp.eq.s32.totalorder %s36, 0
    %p309 = por %p307, %p308
    %p310 = scmp.ne.s32.totalorder %s298, %s299
    %p311 = scmp.eq.s32.totalorder %s37, 1
    %p312 = por %p310, %p311
    %p314 = scmp.ne.s32.totalorder %s299, %s313
    %p315 = scmp.eq.s32.totalorder %s37, 0
    %p316 = por %p314, %p315
    %s318 = sadd.s32 %s317, 1
    %p321 = scmp.eq.s32.totalorder %s31, 1
    %p322 = scmp.ne.s32.totalorder %s317, %s319
    %p323 = scmp.eq.s32.totalorder %s31, 0
    %p324 = por %p322, %p323
    %p325 = scmp.ne.s32.totalorder %s317, %s319
    %p326 = scmp.eq.s32.totalorder %s36, 1
    %p327 = por %p325, %p326
    %p328 = scmp.ne.s32.totalorder %s319, %s320
    %p329 = scmp.eq.s32.totalorder %s36, 0
    %p330 = por %p328, %p329
    %p331 = scmp.ne.s32.totalorder %s319, %s320
    %p332 = scmp.eq.s32.totalorder %s37, 1
    %p333 = por %p331, %p332
    %p335 = scmp.ne.s32.totalorder %s320, %s334
    %p336 = scmp.eq.s32.totalorder %s37, 0
    %p337 = por %p335, %p336
    %s339 = sadd.s32 %s338, 1
    %p342 = scmp.eq.s32.totalorder %s31, 1
    %p343 = scmp.ne.s32.totalorder %s338, %s340
    %p344 = scmp.eq.s32.totalorder %s31, 0
    %p345 = por %p343, %p344
    %p346 = scmp.ne.s32.totalorder %s338, %s340
    %p347 = scmp.eq.s32.totalorder %s36, 1
    %p348 = por %p346, %p347
    %p349 = scmp.ne.s32.totalorder %s340, %s341
    %p350 = scmp.eq.s32.totalorder %s36, 0
    %p351 = por %p349, %p350
    %p352 = scmp.ne.s32.totalorder %s340, %s341
    %p353 = scmp.eq.s32.totalorder %s37, 1
    %p354 = por %p352, %p353
    %p356 = scmp.ne.s32.totalorder %s341, %s355
    %p357 = scmp.eq.s32.totalorder %s37, 0
    %p358 = por %p356, %p357
    %s360 = sadd.s32 %s359, 1
    %p363 = scmp.eq.s32.totalorder %s31, 1
    %p364 = scmp.ne.s32.totalorder %s359, %s361
    %p365 = scmp.eq.s32.totalorder %s31, 0
    %p366 = por %p364, %p365
    %p367 = scmp.ne.s32.totalorder %s359, %s361
    %p368 = scmp.eq.s32.totalorder %s36, 1
    %p369 = por %p367, %p368
    %p370 = scmp.ne.s32.totalorder %s361, %s362
    %p371 = scmp.eq.s32.totalorder %s36, 0
    %p372 = por %p370, %p371
    %p373 = scmp.ne.s32.totalorder %s361, %s362
    %p374 = scmp.eq.s32.totalorder %s37, 1
    %p375 = por %p373, %p374
    %p377 = scmp.ne.s32.totalorder %s362, %s376
    %p378 = scmp.eq.s32.totalorder %s37, 0
    %p379 = por %p377, %p378
    %s381 = sadd.s32 %s380, 1
    %p384 = scmp.eq.s32.totalorder %s31, 1
    %p385 = scmp.ne.s32.totalorder %s380, %s382
    %p386 = scmp.eq.s32.totalorder %s31, 0
    %p387 = por %p385, %p386
    %p388 = scmp.ne.s32.totalorder %s380, %s382
    %p389 = scmp.eq.s32.totalorder %s36, 1
    %p390 = por %p388, %p389
    %p391 = scmp.ne.s32.totalorder %s382, %s383
    %p392 = scmp.eq.s32.totalorder %s36, 0
    %p393 = por %p391, %p392
    %p394 = scmp.ne.s32.totalorder %s382, %s383
    %p395 = scmp.eq.s32.totalorder %s37, 1
    %p396 = por %p394, %p395
    %p398 = scmp.ne.s32.totalorder %s383, %s397
    %p399 = scmp.eq.s32.totalorder %s37, 0
    %p400 = por %p398, %p399
    %s402 = sadd.s32 %s401, 1
    %p405 = scmp.eq.s32.totalorder %s31, 1
    %p406 = scmp.ne.s32.totalorder %s401, %s403
    %p407 = scmp.eq.s32.totalorder %s31, 0
    %p408 = por %p406, %p407
    %p409 = scmp.ne.s32.totalorder %s401, %s403
    %p410 = scmp.eq.s32.totalorder %s36, 1
    %p411 = por %p409, %p410
    %p412 = scmp.ne.s32.totalorder %s403, %s404
    %p413 = scmp.eq.s32.totalorder %s36, 0
    %p414 = por %p412, %p413
    %p415 = scmp.ne.s32.totalorder %s403, %s404
    %p416 = scmp.eq.s32.totalorder %s37, 1
    %p417 = por %p415, %p416
    %p419 = scmp.ne.s32.totalorder %s404, %s418
    %p420 = scmp.eq.s32.totalorder %s37, 0
    %p421 = por %p419, %p420
    %s423 = sadd.s32 %s422, 1
    %p426 = scmp.eq.s32.totalorder %s31, 1
    %p427 = scmp.ne.s32.totalorder %s422, %s424
    %p428 = scmp.eq.s32.totalorder %s31, 0
    %p429 = por %p427, %p428
    %p430 = scmp.ne.s32.totalorder %s422, %s424
    %p431 = scmp.eq.s32.totalorder %s36, 1
    %p432 = por %p430, %p431
    %p433 = scmp.ne.s32.totalorder %s424, %s425
    %p434 = scmp.eq.s32.totalorder %s36, 0
    %p435 = por %p433, %p434
    %p436 = scmp.ne.s32.totalorder %s424, %s425
    %p437 = scmp.eq.s32.totalorder %s37, 1
    %p438 = por %p436, %p437
    %p440 = scmp.ne.s32.totalorder %s425, %s439
    %p441 = scmp.eq.s32.totalorder %s37, 0
    %p442 = por %p440, %p441
    %s444 = sadd.s32 %s443, 1
    %p447 = scmp.eq.s32.totalorder %s31, 1
    %p448 = scmp.ne.s32.totalorder %s443, %s445
    %p449 = scmp.eq.s32.totalorder %s31, 0
    %p450 = por %p448, %p449
    %p451 = scmp.ne.s32.totalorder %s443, %s445
    %p452 = scmp.eq.s32.totalorder %s36, 1
    %p453 = por %p451, %p452
    %p454 = scmp.ne.s32.totalorder %s445, %s446
    %p455 = scmp.eq.s32.totalorder %s36, 0
    %p456 = por %p454, %p455
    %p457 = scmp.ne.s32.totalorder %s445, %s446
    %p458 = scmp.eq.s32.totalorder %s37, 1
    %p459 = por %p457, %p458
    %p461 = scmp.ne.s32.totalorder %s446, %s460
    %p462 = scmp.eq.s32.totalorder %s37, 0
    %p463 = por %p461, %p462
    %s465 = sadd.s32 %s464, 1
    %p468 = scmp.eq.s32.totalorder %s31, 1
    %p469 = scmp.ne.s32.totalorder %s464, %s466
    %p470 = scmp.eq.s32.totalorder %s31, 0
    %p471 = por %p469, %p470
    %p472 = scmp.ne.s32.totalorder %s464, %s466
    %p473 = scmp.eq.s32.totalorder %s36, 1
    %p474 = por %p472, %p473
    %p475 = scmp.ne.s32.totalorder %s466, %s467
    %p476 = scmp.eq.s32.totalorder %s36, 0
    %p477 = por %p475, %p476
    %p478 = scmp.ne.s32.totalorder %s466, %s467
    %p479 = scmp.eq.s32.totalorder %s37, 1
    %p480 = por %p478, %p479
    %p482 = scmp.ne.s32.totalorder %s467, %s481
    %p483 = scmp.eq.s32.totalorder %s37, 0
    %p484 = por %p482, %p483
    %s486 = sadd.s32 %s485, 1
    %p489 = scmp.eq.s32.totalorder %s31, 1
    %p490 = scmp.ne.s32.totalorder %s485, %s487
    %p491 = scmp.eq.s32.totalorder %s31, 0
    %p492 = por %p490, %p491
    %p493 = scmp.ne.s32.totalorder %s485, %s487
    %p494 = scmp.eq.s32.totalorder %s36, 1
    %p495 = por %p493, %p494
    %p496 = scmp.ne.s32.totalorder %s487, %s488
    %p497 = scmp.eq.s32.totalorder %s36, 0
    %p498 = por %p496, %p497
    %p499 = scmp.ne.s32.totalorder %s487, %s488
    %p500 = scmp.eq.s32.totalorder %s37, 1
    %p501 = por %p499, %p500
    %p503 = scmp.ne.s32.totalorder %s488, %s502
    %p504 = scmp.eq.s32.totalorder %s37, 0
    %p505 = por %p503, %p504
    %s507 = sadd.s32 %s506, 1
    %p510 = scmp.eq.s32.totalorder %s31, 1
    %p511 = scmp.ne.s32.totalorder %s506, %s508
    %p512 = scmp.eq.s32.totalorder %s31, 0
    %p513 = por %p511, %p512
    %p514 = scmp.ne.s32.totalorder %s506, %s508
    %p515 = scmp.eq.s32.totalorder %s36, 1
    %p516 = por %p514, %p515
    %p517 = scmp.ne.s32.totalorder %s508, %s509
    %p518 = scmp.eq.s32.totalorder %s36, 0
    %p519 = por %p517, %p518
    %p520 = scmp.ne.s32.totalorder %s508, %s509
    %p521 = scmp.eq.s32.totalorder %s37, 1
    %p522 = por %p520, %p521
    %p524 = scmp.ne.s32.totalorder %s509, %s523
    %p525 = scmp.eq.s32.totalorder %s37, 0
    %p526 = por %p524, %p525
    %s528 = sadd.s32 %s527, 1
    %p531 = scmp.eq.s32.totalorder %s31, 1
    %p532 = scmp.ne.s32.totalorder %s527, %s529
    %p533 = scmp.eq.s32.totalorder %s31, 0
    %p534 = por %p532, %p533
    %p535 = scmp.ne.s32.totalorder %s527, %s529
    %p536 = scmp.eq.s32.totalorder %s36, 1
    %p537 = por %p535, %p536
    %p538 = scmp.ne.s32.totalorder %s529, %s530
    %p539 = scmp.eq.s32.totalorder %s36, 0
    %p540 = por %p538, %p539
    %p541 = scmp.ne.s32.totalorder %s529, %s530
    %p542 = scmp.eq.s32.totalorder %s37, 1
    %p543 = por %p541, %p542
    %p545 = scmp.ne.s32.totalorder %s530, %s544
    %p546 = scmp.eq.s32.totalorder %s37, 0
    %p547 = por %p545, %p546
    %s549 = sadd.s32 %s548, 1
    %p552 = scmp.eq.s32.totalorder %s31, 1
    %p553 = scmp.ne.s32.totalorder %s548, %s550
    %p554 = scmp.eq.s32.totalorder %s31, 0
    %p555 = por %p553, %p554
    %p556 = scmp.ne.s32.totalorder %s548, %s550
    %p557 = scmp.eq.s32.totalorder %s36, 1
    %p558 = por %p556, %p557
    %p559 = scmp.ne.s32.totalorder %s550, %s551
    %p560 = scmp.eq.s32.totalorder %s36, 0
    %p561 = por %p559, %p560
    %p562 = scmp.ne.s32.totalorder %s550, %s551
    %p563 = scmp.eq.s32.totalorder %s37, 1
    %p564 = por %p562, %p563
    %p566 = scmp.ne.s32.totalorder %s551, %s565
    %p567 = scmp.eq.s32.totalorder %s37, 0
    %p568 = por %p566, %p567
    %s569 = ssub.s32 %s31, %s38
    %p570 = scmp.eq.s32.totalorder %s569, 0
    %s572 = sadd.s32 %s571, 1
    %s573 = scalar_select %p570, %s571, %s572
    %p576 = pneg %p570
    %p577 = scmp.eq.s32.totalorder %s31, 1
    %p578 = por %p576, %p577
    %p579 = scmp.ne.s32.totalorder %s571, %s574
    %p580 = scmp.eq.s32.totalorder %s31, 0
    %p581 = por %p579, %p580
    %p582 = scmp.ne.s32.totalorder %s571, %s574
    %p583 = scmp.eq.s32.totalorder %s36, 1
    %p584 = por %p582, %p583
    %p585 = scmp.ne.s32.totalorder %s574, %s575
    %p586 = scmp.eq.s32.totalorder %s36, 0
    %p587 = por %p585, %p586
    %p588 = scmp.ne.s32.totalorder %s574, %s575
    %p589 = scmp.eq.s32.totalorder %s37, 1
    %p590 = por %p588, %p589
    %p592 = scmp.ne.s32.totalorder %s575, %s591
    %p593 = scmp.eq.s32.totalorder %s37, 0
    %p594 = por %p592, %p593
    %p595 = scmp.le.s32.totalorder 1, %s31
    %p596 = scmp.lt.s32.totalorder %s31, 3
    %p597 = pnand %p595, %p596
    %p598 = pneg %p597
    // Predicated region
    $region9: #{conv_autoencoder_forward.1} parent=5 // pred_check
      _
    $region10: #{conv_autoencoder_forward.1} parent=5 // pred_check_branch
      %600 = sbr.rel (%p597) target = $region12
    $region11: #{conv_autoencoder_forward.1} parent=5 // pred_region
      %s601 = ssub.s32 %s31, 1
      // Predicated region
      $region13: #{conv_autoencoder_forward.1} parent=11 // pred_check
        %p602 = pneg %p78
      $region14: #{conv_autoencoder_forward.1} parent=11 // pred_check_branch
        %604 = sbr.rel (%p602) target = $region16
      $region15: #{conv_autoencoder_forward.1} parent=11 // pred_region
        _
      $region16: #{conv_autoencoder_forward.1} parent=11 // pred_fallthru
        _
      // Predicated region
      $region17: #{conv_autoencoder_forward.1} parent=11 // pred_check
        %p605 = pneg %p99
      $region18: #{conv_autoencoder_forward.1} parent=11 // pred_check_branch
        %607 = sbr.rel (%p605) target = $region20
      $region19: #{conv_autoencoder_forward.1} parent=11 // pred_region
        _
      $region20: #{conv_autoencoder_forward.1} parent=11 // pred_fallthru
        _
      // Predicated region
      $region21: #{conv_autoencoder_forward.1} parent=11 // pred_check
        %p608 = pneg %p120
      $region22: #{conv_autoencoder_forward.1} parent=11 // pred_check_branch
        %610 = sbr.rel (%p608) target = $region24
      $region23: #{conv_autoencoder_forward.1} parent=11 // pred_region
        _
      $region24: #{conv_autoencoder_forward.1} parent=11 // pred_fallthru
        _
      // Predicated region
      $region25: #{conv_autoencoder_forward.1} parent=11 // pred_check
        %p611 = pneg %p141
      $region26: #{conv_autoencoder_forward.1} parent=11 // pred_check_branch
        %613 = sbr.rel (%p611) target = $region28
      $region27: #{conv_autoencoder_forward.1} parent=11 // pred_region
        _
      $region28: #{conv_autoencoder_forward.1} parent=11 // pred_fallthru
        _
      // Predicated region
      $region29: #{conv_autoencoder_forward.1} parent=11 // pred_check
        %p614 = pneg %p162
      $region30: #{conv_autoencoder_forward.1} parent=11 // pred_check_branch
        %616 = sbr.rel (%p614) target = $region32
      $region31: #{conv_autoencoder_forward.1} parent=11 // pred_region
        _
      $region32: #{conv_autoencoder_forward.1} parent=11 // pred_fallthru
        _
      // Predicated region
      $region33: #{conv_autoencoder_forward.1} parent=11 // pred_check
        %p617 = pneg %p183
      $region34: #{conv_autoencoder_forward.1} parent=11 // pred_check_branch
        %619 = sbr.rel (%p617) target = $region36
      $region35: #{conv_autoencoder_forward.1} parent=11 // pred_region
        _
      $region36: #{conv_autoencoder_forward.1} parent=11 // pred_fallthru
        _
      // Predicated region
      $region37: #{conv_autoencoder_forward.1} parent=11 // pred_check
        %p620 = pneg %p204
      $region38: #{conv_autoencoder_forward.1} parent=11 // pred_check_branch
        %622 = sbr.rel (%p620) target = $region40
      $region39: #{conv_autoencoder_forward.1} parent=11 // pred_region
        _
      $region40: #{conv_autoencoder_forward.1} parent=11 // pred_fallthru
        _
      // Predicated region
      $region41: #{conv_autoencoder_forward.1} parent=11 // pred_check
        %p623 = pneg %p225
      $region42: #{conv_autoencoder_forward.1} parent=11 // pred_check_branch
        %625 = sbr.rel (%p623) target = $region44
      $region43: #{conv_autoencoder_forward.1} parent=11 // pred_region
        _
      $region44: #{conv_autoencoder_forward.1} parent=11 // pred_fallthru
        _
      // Predicated region
      $region45: #{conv_autoencoder_forward.1} parent=11 // pred_check
        %p626 = pneg %p246
      $region46: #{conv_autoencoder_forward.1} parent=11 // pred_check_branch
        %628 = sbr.rel (%p626) target = $region48
      $region47: #{conv_autoencoder_forward.1} parent=11 // pred_region
        _
      $region48: #{conv_autoencoder_forward.1} parent=11 // pred_fallthru
        _
      // Predicated region
      $region49: #{conv_autoencoder_forward.1} parent=11 // pred_check
        %p629 = pneg %p267
      $region50: #{conv_autoencoder_forward.1} parent=11 // pred_check_branch
        %631 = sbr.rel (%p629) target = $region52
      $region51: #{conv_autoencoder_forward.1} parent=11 // pred_region
        _
      $region52: #{conv_autoencoder_forward.1} parent=11 // pred_fallthru
        _
      // Predicated region
      $region53: #{conv_autoencoder_forward.1} parent=11 // pred_check
        %p632 = pneg %p288
      $region54: #{conv_autoencoder_forward.1} parent=11 // pred_check_branch
        %634 = sbr.rel (%p632) target = $region56
      $region55: #{conv_autoencoder_forward.1} parent=11 // pred_region
        _
      $region56: #{conv_autoencoder_forward.1} parent=11 // pred_fallthru
        _
      // Predicated region
      $region57: #{conv_autoencoder_forward.1} parent=11 // pred_check
        %p635 = pneg %p309
      $region58: #{conv_autoencoder_forward.1} parent=11 // pred_check_branch
        %637 = sbr.rel (%p635) target = $region60
      $region59: #{conv_autoencoder_forward.1} parent=11 // pred_region
        _
      $region60: #{conv_autoencoder_forward.1} parent=11 // pred_fallthru
        _
      // Predicated region
      $region61: #{conv_autoencoder_forward.1} parent=11 // pred_check
        %p638 = pneg %p330
      $region62: #{conv_autoencoder_forward.1} parent=11 // pred_check_branch
        %640 = sbr.rel (%p638) target = $region64
      $region63: #{conv_autoencoder_forward.1} parent=11 // pred_region
        _
      $region64: #{conv_autoencoder_forward.1} parent=11 // pred_fallthru
        _
      // Predicated region
      $region65: #{conv_autoencoder_forward.1} parent=11 // pred_check
        %p641 = pneg %p351
      $region66: #{conv_autoencoder_forward.1} parent=11 // pred_check_branch
        %643 = sbr.rel (%p641) target = $region68
      $region67: #{conv_autoencoder_forward.1} parent=11 // pred_region
        _
      $region68: #{conv_autoencoder_forward.1} parent=11 // pred_fallthru
        _
      // Predicated region
      $region69: #{conv_autoencoder_forward.1} parent=11 // pred_check
        %p644 = pneg %p372
      $region70: #{conv_autoencoder_forward.1} parent=11 // pred_check_branch
        %646 = sbr.rel (%p644) target = $region72
      $region71: #{conv_autoencoder_forward.1} parent=11 // pred_region
        _
      $region72: #{conv_autoencoder_forward.1} parent=11 // pred_fallthru
        _
      // Predicated region
      $region73: #{conv_autoencoder_forward.1} parent=11 // pred_check
        %p647 = pneg %p393
      $region74: #{conv_autoencoder_forward.1} parent=11 // pred_check_branch
        %649 = sbr.rel (%p647) target = $region76
      $region75: #{conv_autoencoder_forward.1} parent=11 // pred_region
        _
      $region76: #{conv_autoencoder_forward.1} parent=11 // pred_fallthru
        _
      // Predicated region
      $region77: #{conv_autoencoder_forward.1} parent=11 // pred_check
        %p650 = pneg %p414
      $region78: #{conv_autoencoder_forward.1} parent=11 // pred_check_branch
        %652 = sbr.rel (%p650) target = $region80
      $region79: #{conv_autoencoder_forward.1} parent=11 // pred_region
        _
      $region80: #{conv_autoencoder_forward.1} parent=11 // pred_fallthru
        _
      // Predicated region
      $region81: #{conv_autoencoder_forward.1} parent=11 // pred_check
        %p653 = pneg %p435
      $region82: #{conv_autoencoder_forward.1} parent=11 // pred_check_branch
        %655 = sbr.rel (%p653) target = $region84
      $region83: #{conv_autoencoder_forward.1} parent=11 // pred_region
        _
      $region84: #{conv_autoencoder_forward.1} parent=11 // pred_fallthru
        _
      // Predicated region
      $region85: #{conv_autoencoder_forward.1} parent=11 // pred_check
        %p656 = pneg %p456
      $region86: #{conv_autoencoder_forward.1} parent=11 // pred_check_branch
        %658 = sbr.rel (%p656) target = $region88
      $region87: #{conv_autoencoder_forward.1} parent=11 // pred_region
        _
      $region88: #{conv_autoencoder_forward.1} parent=11 // pred_fallthru
        _
      // Predicated region
      $region89: #{conv_autoencoder_forward.1} parent=11 // pred_check
        %p659 = pneg %p477
      $region90: #{conv_autoencoder_forward.1} parent=11 // pred_check_branch
        %661 = sbr.rel (%p659) target = $region92
      $region91: #{conv_autoencoder_forward.1} parent=11 // pred_region
        _
      $region92: #{conv_autoencoder_forward.1} parent=11 // pred_fallthru
        _
      // Predicated region
      $region93: #{conv_autoencoder_forward.1} parent=11 // pred_check
        %p662 = pneg %p498
      $region94: #{conv_autoencoder_forward.1} parent=11 // pred_check_branch
        %664 = sbr.rel (%p662) target = $region96
      $region95: #{conv_autoencoder_forward.1} parent=11 // pred_region
        _
      $region96: #{conv_autoencoder_forward.1} parent=11 // pred_fallthru
        _
      // Predicated region
      $region97: #{conv_autoencoder_forward.1} parent=11 // pred_check
        %p665 = pneg %p519
      $region98: #{conv_autoencoder_forward.1} parent=11 // pred_check_branch
        %667 = sbr.rel (%p665) target = $region100
      $region99: #{conv_autoencoder_forward.1} parent=11 // pred_region
        _
      $region100: #{conv_autoencoder_forward.1} parent=11 // pred_fallthru
        _
      // Predicated region
      $region101: #{conv_autoencoder_forward.1} parent=11 // pred_check
        %p668 = pneg %p540
      $region102: #{conv_autoencoder_forward.1} parent=11 // pred_check_branch
        %670 = sbr.rel (%p668) target = $region104
      $region103: #{conv_autoencoder_forward.1} parent=11 // pred_region
        _
      $region104: #{conv_autoencoder_forward.1} parent=11 // pred_fallthru
        _
      // Predicated region
      $region105: #{conv_autoencoder_forward.1} parent=11 // pred_check
        %p671 = pneg %p561
      $region106: #{conv_autoencoder_forward.1} parent=11 // pred_check_branch
        %673 = sbr.rel (%p671) target = $region108
      $region107: #{conv_autoencoder_forward.1} parent=11 // pred_region
        _
      $region108: #{conv_autoencoder_forward.1} parent=11 // pred_fallthru
        _
    $region12: #{conv_autoencoder_forward.1} parent=5 // pred_fallthru
      _
    %p674 = scmp.lt.s32.totalorder %s31, 2
    // Predicated region
    $region109: #{conv_autoencoder_forward.1} parent=5 // pred_check
      %p675 = pneg %p674
    $region110: #{conv_autoencoder_forward.1} parent=5 // pred_check_branch
      %677 = sbr.rel (%p675) target = $region112
    $region111: #{conv_autoencoder_forward.1} parent=5 // pred_region
      // Predicated region
      $region113: #{conv_autoencoder_forward.1} parent=111 // pred_check
        %p678 = pneg %p51
      $region114: #{conv_autoencoder_forward.1} parent=111 // pred_check_branch
        %680 = sbr.rel (%p678) target = $region116
      $region115: #{conv_autoencoder_forward.1} parent=111 // pred_region
        %p681 = scmp.lt.s32.totalorder %s31, 1
        %s682 = scalar_select %p681, %s31, 1
        %s683 = smul.addr %s682, 2
        %s684 = smul.addr %s683, 8
        %s685 = scalar_lea.vmem %s0, %s684
      $region116: #{conv_autoencoder_forward.1} parent=111 // pred_fallthru
        _
    $region112: #{conv_autoencoder_forward.1} parent=5 // pred_fallthru
      _
    %p686 = scmp.le.s32.totalorder 1, %s31
    %p687 = scmp.lt.s32.totalorder %s31, 3
    %p688 = pnand %p686, %p687
    %p689 = pneg %p688
    // Predicated region
    $region117: #{conv_autoencoder_forward.1} parent=5 // pred_check
      _
    $region118: #{conv_autoencoder_forward.1} parent=5 // pred_check_branch
      %691 = sbr.rel (%p688) target = $region120
    $region119: #{conv_autoencoder_forward.1} parent=5 // pred_region
      %s692 = ssub.s32 %s31, 1
      %p693 = scmp.lt.s32.totalorder %s36, 1
      %s694 = scalar_select %p693, %s36, 1
      %s695 = smul.addr %s694, 2
      %s696 = smul.addr %s695, 8
      %s697 = scalar_lea.vmem %s0, %s696
      %p698 = pneg %p57
      %p699 = pneg %p54
      %p700 = pneg %p78
      %p701 = pneg %p75
      %p702 = pneg %p99
      %p703 = pneg %p96
      %p704 = pneg %p120
      %p705 = pneg %p117
      %p706 = pneg %p141
      %p707 = pneg %p138
      %p708 = pneg %p162
      %p709 = pneg %p159
      %p710 = pneg %p183
      %p711 = pneg %p180
      %p712 = pneg %p204
      %p713 = pneg %p201
      %p714 = pneg %p225
      %p715 = pneg %p222
      %p716 = pneg %p246
      %p717 = pneg %p243
      %p718 = pneg %p267
      %p719 = pneg %p264
      %p720 = pneg %p288
      %p721 = pneg %p285
      %p722 = pneg %p309
      %p723 = pneg %p306
      %p724 = pneg %p330
      %p725 = pneg %p327
      %p726 = pneg %p351
      %p727 = pneg %p348
      %p728 = pneg %p372
      %p729 = pneg %p369
      %p730 = pneg %p393
      %p731 = pneg %p390
      %p732 = pneg %p414
      %p733 = pneg %p411
      %p734 = pneg %p435
      %p735 = pneg %p432
      %p736 = pneg %p456
      %p737 = pneg %p453
      %p738 = pneg %p477
      %p739 = pneg %p474
      %p740 = pneg %p498
      %p741 = pneg %p495
      %p742 = pneg %p519
      %p743 = pneg %p516
      %p744 = pneg %p540
      %p745 = pneg %p537
      %p746 = pneg %p561
      %p747 = pneg %p558
      %p748 = pneg %p587
      %p749 = pneg %p584
      %p750 = scmp.lt.s32.totalorder %s36, 1
      %s751 = scalar_select %p750, %s36, 1
      %s752 = smul.addr %s751, 2
      %s753 = smul.addr %s752, 8
      %s754 = scalar_lea.vmem %s25, %s753
      %p755 = scmp.lt.s32.totalorder %s36, 1
      %s756 = scalar_select %p755, %s36, 1
      %s757 = smul.addr %s756, 2
      %s758 = smul.addr %s757, 8
      %s759 = scalar_lea.vmem %s0, %s758
      %p760 = scmp.lt.s32.totalorder %s36, 1
      %s761 = scalar_select %p760, %s36, 1
      %s762 = smul.addr %s761, 2
      %s763 = smul.addr %s762, 8
      %s764 = scalar_lea.vmem %s25, %s763
      %v765 = vld [vmem:[%s759] sm:$0xff]
      %v766 = vld [vmem:[%s759 + $0x8] sm:$0xff]
      %v767 = vld [vmem:[%s1] sm:$0x3f]
      %v768 = vld [vmem:[%s3] sm:$0xf]
      %vm769 = vcmask 31744
      %v771 = vsel %vm769, %v765, 0
      %v774 = vsel %vm769, %v766, 0
      %vm776 = vcmask 1043456
      %v778 = vsel %vm776, %v768, 0
      %780 = vmatpush.msra.mxu0 0.0
      %781 = vmatpush.msra.mxu0 0.0
      %782 = vmatpush.msra.mxu0 0.0
      %783 = vmatpush.msra.mxu0 0.0
      %784 = vmatpush.msra.mxu0 0.0
      %785 = vmatpush.msra.mxu0 0.0
      %786 = vmatpush.msra.mxu0 0.0
      %787 = vmatpush.msra.mxu0 0.0
      %788 = vmatpush.msra.mxu0 0.0
      %789 = vmatpush.msra.mxu0 0.0
      %790 = vmatpush.msra.mxu0 0.0
      %791 = vmatpush.msra.mxu0 0.0
      %792 = vmatpush.msra.mxu0 0.0
      %793 = vmatpush.msra.mxu0 0.0
      %794 = vmatpush.msra.mxu0 0.0
      %795 = vmatpush.msra.mxu0 %v778
      %796 = vmatmul.f32.gmra.mxu0 %v771
      %v797 = vpop.f32.mrf.mxu0
      %v798 = vadd.f32 0.0, %v797
      %799 = vmatmul.f32.gmra.mxu0 %v774
      %v800 = vpop.f32.mrf.mxu0
      %v801 = vadd.f32 0.0, %v800
      %802 = vdwg.mxu0
      %v803 = vld [vmem:[%s2] sm:$0x3f]
      %v804 = vld [vmem:[%s4] sm:$0xf]
      %v806 = vsel %vm776, %v804, 0
      %808 = vmatpush.msra.mxu0 0.0
      %809 = vmatpush.msra.mxu0 0.0
      %810 = vmatpush.msra.mxu0 0.0
      %811 = vmatpush.msra.mxu0 0.0
      %812 = vmatpush.msra.mxu0 0.0
      %813 = vmatpush.msra.mxu0 0.0
      %814 = vmatpush.msra.mxu0 0.0
      %815 = vmatpush.msra.mxu0 0.0
      %816 = vmatpush.msra.mxu0 0.0
      %817 = vmatpush.msra.mxu0 0.0
      %818 = vmatpush.msra.mxu0 0.0
      %819 = vmatpush.msra.mxu0 0.0
      %820 = vmatpush.msra.mxu0 0.0
      %821 = vmatpush.msra.mxu0 0.0
      %822 = vmatpush.msra.mxu0 0.0
      %823 = vmatpush.msra.mxu0 %v806
      %824 = vmatmul.f32.gmra.mxu0 %v771
      %v825 = vpop.f32.mrf.mxu0
      %v826 = vadd.f32 0.0, %v825
      %827 = vmatmul.f32.gmra.mxu0 %v774
      %v828 = vpop.f32.mrf.mxu0
      %v829 = vadd.f32 0.0, %v828
      %830 = vdwg.mxu0
      %vm831 = vcmask 130048
      %v833 = vsel %vm831, %v803, 0
      %835 = vmatpush.msra.mxu0 0.0
      %836 = vmatpush.msra.mxu0 0.0
      %837 = vmatpush.msra.mxu0 0.0
      %838 = vmatpush.msra.mxu0 0.0
      %839 = vmatpush.msra.mxu0 0.0
      %840 = vmatpush.msra.mxu0 0.0
      %841 = vmatpush.msra.mxu0 0.0
      %842 = vmatpush.msra.mxu0 0.0
      %843 = vmatpush.msra.mxu0 0.0
      %844 = vmatpush.msra.mxu0 0.0
      %845 = vmatpush.msra.mxu0 0.0
      %846 = vmatpush.msra.mxu0 0.0
      %847 = vmatpush.msra.mxu0 0.0
      %848 = vmatpush.msra.mxu0 0.0
      %849 = vmatpush.msra.mxu0 %v829
      %850 = vmatpush.msra.mxu0 %v826
      %851 = vmatmul.f32.gmra.mxu0 %v833
      %v852 = vpop.f32.mrf.mxu0
      %v853 = vadd.f32 0.0, %v852
      %854 = vdwg.mxu0
      %v856 = vsel %vm831, %v767, 0
      %858 = vmatpush.msra.mxu0 0.0
      %859 = vmatpush.msra.mxu0 0.0
      %860 = vmatpush.msra.mxu0 0.0
      %861 = vmatpush.msra.mxu0 0.0
      %862 = vmatpush.msra.mxu0 0.0
      %863 = vmatpush.msra.mxu0 0.0
      %864 = vmatpush.msra.mxu0 0.0
      %865 = vmatpush.msra.mxu0 0.0
      %866 = vmatpush.msra.mxu0 0.0
      %867 = vmatpush.msra.mxu0 0.0
      %868 = vmatpush.msra.mxu0 0.0
      %869 = vmatpush.msra.mxu0 0.0
      %870 = vmatpush.msra.mxu0 0.0
      %871 = vmatpush.msra.mxu0 0.0
      %872 = vmatpush.msra.mxu0 %v801
      %873 = vmatpush.msra.mxu0 %v798
      %874 = vmatmul.f32.gmra.mxu0 %v856
      %v875 = vpop.f32.mrf.mxu0
      %v876 = vadd.f32 %v853, %v875
      %877 = vdwg.mxu0
      %v878 = vld [vmem:[%s5] sm:$0x1]
      %v880 = vperm.slane %v878, 0
      %v882 = vadd.f32 %v876, %v880
      %v883 = vmax.f32 %v882, 0.0
      %v884 = vld [vmem:[%s6] sm:$0x7]
      %v885 = vld [vmem:[%s8] sm:$0xff]
      %v886 = vld [vmem:[%s8 + $0x8] sm:$0xf]
      %vm887 = vcmask 97280
      %v889 = vsel %vm887, %v883, 0
      %v892 = vsel %vm776, %v886, 0
      %894 = vmatpush.msra.mxu0 0.0
      %895 = vmatpush.msra.mxu0 0.0
      %896 = vmatpush.msra.mxu0 0.0
      %897 = vmatpush.msra.mxu0 0.0
      %898 = vmatpush.msra.mxu0 0.0
      %899 = vmatpush.msra.mxu0 0.0
      %900 = vmatpush.msra.mxu0 0.0
      %901 = vmatpush.msra.mxu0 0.0
      %902 = vmatpush.msra.mxu0 0.0
      %903 = vmatpush.msra.mxu0 0.0
      %904 = vmatpush.msra.mxu0 0.0
      %905 = vmatpush.msra.mxu0 0.0
      %906 = vmatpush.msra.mxu0 0.0
      %907 = vmatpush.msra.mxu0 0.0
      %908 = vmatpush.msra.mxu0 %v892
      %909 = vmatpush.msra.mxu0 %v885
      %910 = vmatmul.f32.gmra.mxu0 %v889
      %v911 = vpop.f32.mrf.mxu0
      %v912 = vadd.f32 0.0, %v911
      %913 = vdwg.mxu0
      %v914 = vld [vmem:[%s7] sm:$0x7]
      %v915 = vld [vmem:[%s9] sm:$0xff]
      %v916 = vld [vmem:[%s9 + $0x8] sm:$0xf]
      %v918 = vsel %vm776, %v916, 0
      %920 = vmatpush.msra.mxu0 0.0
      %921 = vmatpush.msra.mxu0 0.0
      %922 = vmatpush.msra.mxu0 0.0
      %923 = vmatpush.msra.mxu0 0.0
      %924 = vmatpush.msra.mxu0 0.0
      %925 = vmatpush.msra.mxu0 0.0
      %926 = vmatpush.msra.mxu0 0.0
      %927 = vmatpush.msra.mxu0 0.0
      %928 = vmatpush.msra.mxu0 0.0
      %929 = vmatpush.msra.mxu0 0.0
      %930 = vmatpush.msra.mxu0 0.0
      %931 = vmatpush.msra.mxu0 0.0
      %932 = vmatpush.msra.mxu0 0.0
      %933 = vmatpush.msra.mxu0 0.0
      %934 = vmatpush.msra.mxu0 %v918
      %935 = vmatpush.msra.mxu0 %v915
      %936 = vmatmul.f32.gmra.mxu0 %v889
      %v937 = vpop.f32.mrf.mxu0
      %v938 = vadd.f32 0.0, %v937
      %939 = vdwg.mxu0
      %vm940 = vcmask 48128
      %v942 = vsel %vm940, %v914, 0
      %vm944 = vcmask 1045504
      %v946 = vsel %vm944, %v938, 0
      %948 = vmatpush.msra.mxu0 0.0
      %949 = vmatpush.msra.mxu0 0.0
      %950 = vmatpush.msra.mxu0 0.0
      %951 = vmatpush.msra.mxu0 0.0
      %952 = vmatpush.msra.mxu0 0.0
      %953 = vmatpush.msra.mxu0 0.0
      %954 = vmatpush.msra.mxu0 0.0
      %955 = vmatpush.msra.mxu0 0.0
      %956 = vmatpush.msra.mxu0 0.0
      %957 = vmatpush.msra.mxu0 0.0
      %958 = vmatpush.msra.mxu0 0.0
      %959 = vmatpush.msra.mxu0 0.0
      %960 = vmatpush.msra.mxu0 0.0
      %961 = vmatpush.msra.mxu0 0.0
      %962 = vmatpush.msra.mxu0 0.0
      %963 = vmatpush.msra.mxu0 %v946
      %964 = vmatmul.f32.gmra.mxu0 %v942
      %v965 = vpop.f32.mrf.mxu0
      %v966 = vadd.f32 0.0, %v965
      %967 = vdwg.mxu0
      %v969 = vsel %vm940, %v884, 0
      %v972 = vsel %vm944, %v912, 0
      %974 = vmatpush.msra.mxu0 0.0
      %975 = vmatpush.msra.mxu0 0.0
      %976 = vmatpush.msra.mxu0 0.0
      %977 = vmatpush.msra.mxu0 0.0
      %978 = vmatpush.msra.mxu0 0.0
      %979 = vmatpush.msra.mxu0 0.0
      %980 = vmatpush.msra.mxu0 0.0
      %981 = vmatpush.msra.mxu0 0.0
      %982 = vmatpush.msra.mxu0 0.0
      %983 = vmatpush.msra.mxu0 0.0
      %984 = vmatpush.msra.mxu0 0.0
      %985 = vmatpush.msra.mxu0 0.0
      %986 = vmatpush.msra.mxu0 0.0
      %987 = vmatpush.msra.mxu0 0.0
      %988 = vmatpush.msra.mxu0 0.0
      %989 = vmatpush.msra.mxu0 %v972
      %990 = vmatmul.f32.gmra.mxu0 %v969
      %v991 = vpop.f32.mrf.mxu0
      %v992 = vadd.f32 %v966, %v991
      %993 = vdwg.mxu0
      %v994 = vld [vmem:[%s10] sm:$0x1]
      %v996 = vperm.slane %v994, 0
      %v998 = vadd.f32 %v992, %v996
      %v999 = vmax.f32 %v998, 0.0
      %v1000 = vld [vmem:[%s11] sm:$0x3]
      %v1001 = vld [vmem:[%s13] sm:$0xff]
      %v1002 = vld [vmem:[%s13 + $0x8] sm:$0xff]
      %v1003 = vld [vmem:[%s13 + $0x10] sm:$0xff]
      %vm1004 = vcmask 195584
      %v1006 = vsel %vm1004, %v999, 0
      %1008 = vmatpush.msra.mxu0 0.0
      %1009 = vmatpush.msra.mxu0 0.0
      %1010 = vmatpush.msra.mxu0 0.0
      %1011 = vmatpush.msra.mxu0 0.0
      %1012 = vmatpush.msra.mxu0 0.0
      %1013 = vmatpush.msra.mxu0 0.0
      %1014 = vmatpush.msra.mxu0 0.0
      %1015 = vmatpush.msra.mxu0 0.0
      %1016 = vmatpush.msra.mxu0 0.0
      %1017 = vmatpush.msra.mxu0 0.0
      %1018 = vmatpush.msra.mxu0 0.0
      %1019 = vmatpush.msra.mxu0 0.0
      %1020 = vmatpush.msra.mxu0 0.0
      %1021 = vmatpush.msra.mxu0 %v1003
      %1022 = vmatpush.msra.mxu0 %v1002
      %1023 = vmatpush.msra.mxu0 %v1001
      %1024 = vmatmul.f32.gmra.mxu0 %v1006
      %v1025 = vpop.f32.mrf.mxu0
      %v1026 = vadd.f32 0.0, %v1025
      %1027 = vdwg.mxu0
      %v1028 = vld [vmem:[%s12] sm:$0x3]
      %v1029 = vld [vmem:[%s14] sm:$0xff]
      %v1030 = vld [vmem:[%s14 + $0x8] sm:$0xff]
      %v1031 = vld [vmem:[%s14 + $0x10] sm:$0xff]
      %1032 = vmatpush.msra.mxu0 0.0
      %1033 = vmatpush.msra.mxu0 0.0
      %1034 = vmatpush.msra.mxu0 0.0
      %1035 = vmatpush.msra.mxu0 0.0
      %1036 = vmatpush.msra.mxu0 0.0
      %1037 = vmatpush.msra.mxu0 0.0
      %1038 = vmatpush.msra.mxu0 0.0
      %1039 = vmatpush.msra.mxu0 0.0
      %1040 = vmatpush.msra.mxu0 0.0
      %1041 = vmatpush.msra.mxu0 0.0
      %1042 = vmatpush.msra.mxu0 0.0
      %1043 = vmatpush.msra.mxu0 0.0
      %1044 = vmatpush.msra.mxu0 0.0
      %1045 = vmatpush.msra.mxu0 %v1031
      %1046 = vmatpush.msra.mxu0 %v1030
      %1047 = vmatpush.msra.mxu0 %v1029
      %1048 = vmatmul.f32.gmra.mxu0 %v1006
      %v1049 = vpop.f32.mrf.mxu0
      %v1050 = vadd.f32 0.0, %v1049
      %1051 = vdwg.mxu0
      %vm1052 = vcmask 23552
      %v1054 = vsel %vm1052, %v1028, 0
      %vm1056 = vcmask 1042432
      %v1058 = vsel %vm1056, %v1050, 0
      %1060 = vmatpush.msra.mxu0 0.0
      %1061 = vmatpush.msra.mxu0 0.0
      %1062 = vmatpush.msra.mxu0 0.0
      %1063 = vmatpush.msra.mxu0 0.0
      %1064 = vmatpush.msra.mxu0 0.0
      %1065 = vmatpush.msra.mxu0 0.0
      %1066 = vmatpush.msra.mxu0 0.0
      %1067 = vmatpush.msra.mxu0 0.0
      %1068 = vmatpush.msra.mxu0 0.0
      %1069 = vmatpush.msra.mxu0 0.0
      %1070 = vmatpush.msra.mxu0 0.0
      %1071 = vmatpush.msra.mxu0 0.0
      %1072 = vmatpush.msra.mxu0 0.0
      %1073 = vmatpush.msra.mxu0 0.0
      %1074 = vmatpush.msra.mxu0 0.0
      %1075 = vmatpush.msra.mxu0 %v1058
      %1076 = vmatmul.f32.gmra.mxu0 %v1054
      %v1077 = vpop.f32.mrf.mxu0
      %v1078 = vadd.f32 0.0, %v1077
      %1079 = vdwg.mxu0
      %v1081 = vsel %vm1052, %v1000, 0
      %v1084 = vsel %vm1056, %v1026, 0
      %1086 = vmatpush.msra.mxu0 0.0
      %1087 = vmatpush.msra.mxu0 0.0
      %1088 = vmatpush.msra.mxu0 0.0
      %1089 = vmatpush.msra.mxu0 0.0
      %1090 = vmatpush.msra.mxu0 0.0
      %1091 = vmatpush.msra.mxu0 0.0
      %1092 = vmatpush.msra.mxu0 0.0
      %1093 = vmatpush.msra.mxu0 0.0
      %1094 = vmatpush.msra.mxu0 0.0
      %1095 = vmatpush.msra.mxu0 0.0
      %1096 = vmatpush.msra.mxu0 0.0
      %1097 = vmatpush.msra.mxu0 0.0
      %1098 = vmatpush.msra.mxu0 0.0
      %1099 = vmatpush.msra.mxu0 0.0
      %1100 = vmatpush.msra.mxu0 0.0
      %1101 = vmatpush.msra.mxu0 %v1084
      %1102 = vmatmul.f32.gmra.mxu0 %v1081
      %v1103 = vpop.f32.mrf.mxu0
      %v1104 = vadd.f32 %v1078, %v1103
      %1105 = vdwg.mxu0
      %v1106 = vld [vmem:[%s15] sm:$0x1]
      %v1108 = vperm.slane %v1106, 0
      %v1110 = vadd.f32 %v1104, %v1108
      %v1111 = vld [vmem:[%s16] sm:$0x7]
      %v1112 = vld [vmem:[%s17] sm:$0xff]
      %vm1113 = vcmask 64512
      %v1115 = vsel %vm1113, %v1110, 0
      %1117 = vmatpush.msra.mxu0 0.0
      %1118 = vmatpush.msra.mxu0 0.0
      %1119 = vmatpush.msra.mxu0 0.0
      %1120 = vmatpush.msra.mxu0 0.0
      %1121 = vmatpush.msra.mxu0 0.0
      %1122 = vmatpush.msra.mxu0 0.0
      %1123 = vmatpush.msra.mxu0 0.0
      %1124 = vmatpush.msra.mxu0 0.0
      %1125 = vmatpush.msra.mxu0 0.0
      %1126 = vmatpush.msra.mxu0 0.0
      %1127 = vmatpush.msra.mxu0 0.0
      %1128 = vmatpush.msra.mxu0 0.0
      %1129 = vmatpush.msra.mxu0 0.0
      %1130 = vmatpush.msra.mxu0 0.0
      %1131 = vmatpush.msra.mxu0 0.0
      %1132 = vmatpush.msra.mxu0 %v1112
      %1133 = vmatmul.f32.gmra.mxu0 %v1115
      %v1134 = vpop.f32.mrf.mxu0
      %v1135 = vadd.f32 0.0, %v1134
      %1136 = vdwg.mxu0
      %v1137 = vld [vmem:[%s18] sm:$0x1]
      %v1139 = vperm.slane %v1137, 0
      %vm1141 = vcmask 15360
      %v1143 = vsel %vm1141, %v1111, 0
      %vm1145 = vcmask 1041408
      %v1147 = vsel %vm1145, %v1135, 0
      %1149 = vmatpush.msra.mxu0 0.0
      %1150 = vmatpush.msra.mxu0 0.0
      %1151 = vmatpush.msra.mxu0 0.0
      %1152 = vmatpush.msra.mxu0 0.0
      %1153 = vmatpush.msra.mxu0 0.0
      %1154 = vmatpush.msra.mxu0 0.0
      %1155 = vmatpush.msra.mxu0 0.0
      %1156 = vmatpush.msra.mxu0 0.0
      %1157 = vmatpush.msra.mxu0 0.0
      %1158 = vmatpush.msra.mxu0 0.0
      %1159 = vmatpush.msra.mxu0 0.0
      %1160 = vmatpush.msra.mxu0 0.0
      %1161 = vmatpush.msra.mxu0 0.0
      %1162 = vmatpush.msra.mxu0 0.0
      %1163 = vmatpush.msra.mxu0 0.0
      %1164 = vmatpush.msra.mxu0 %v1147
      %1165 = vmatmul.f32.gmra.mxu0 %v1143
      %v1166 = vpop.f32.mrf.mxu0
      %v1167 = vadd.f32 %v1139, %v1166
      %1168 = vdwg.mxu0
      %v1169 = vmax.f32 %v1167, 0.0
      %v1170 = vld [vmem:[%s19] sm:$0x1f]
      %v1171 = vld [vmem:[%s20] sm:$0xff]
      %v1172 = vld [vmem:[%s20 + $0x8] sm:$0xff]
      %v1173 = vld [vmem:[%s20 + $0x10] sm:$0xff]
      %v1175 = vsel %vm1004, %v1169, 0
      %1177 = vmatpush.msra.mxu0 0.0
      %1178 = vmatpush.msra.mxu0 0.0
      %1179 = vmatpush.msra.mxu0 0.0
      %1180 = vmatpush.msra.mxu0 0.0
      %1181 = vmatpush.msra.mxu0 0.0
      %1182 = vmatpush.msra.mxu0 0.0
      %1183 = vmatpush.msra.mxu0 0.0
      %1184 = vmatpush.msra.mxu0 0.0
      %1185 = vmatpush.msra.mxu0 0.0
      %1186 = vmatpush.msra.mxu0 0.0
      %1187 = vmatpush.msra.mxu0 0.0
      %1188 = vmatpush.msra.mxu0 0.0
      %1189 = vmatpush.msra.mxu0 0.0
      %1190 = vmatpush.msra.mxu0 %v1173
      %1191 = vmatpush.msra.mxu0 %v1172
      %1192 = vmatpush.msra.mxu0 %v1171
      %1193 = vmatmul.f32.gmra.mxu0 %v1175
      %v1194 = vpop.f32.mrf.mxu0
      %v1195 = vadd.f32 0.0, %v1194
      %1196 = vdwg.mxu0
      %v1197 = vld [vmem:[%s21] sm:$0x1]
      %v1199 = vperm.slane %v1197, 0
      %v1202 = vsel %vm1052, %v1170, 0
      %v1205 = vsel %vm1056, %v1195, 0
      %1207 = vmatpush.msra.mxu0 0.0
      %1208 = vmatpush.msra.mxu0 0.0
      %1209 = vmatpush.msra.mxu0 0.0
      %1210 = vmatpush.msra.mxu0 0.0
      %1211 = vmatpush.msra.mxu0 0.0
      %1212 = vmatpush.msra.mxu0 0.0
      %1213 = vmatpush.msra.mxu0 0.0
      %1214 = vmatpush.msra.mxu0 0.0
      %1215 = vmatpush.msra.mxu0 0.0
      %1216 = vmatpush.msra.mxu0 0.0
      %1217 = vmatpush.msra.mxu0 0.0
      %1218 = vmatpush.msra.mxu0 0.0
      %1219 = vmatpush.msra.mxu0 0.0
      %1220 = vmatpush.msra.mxu0 0.0
      %1221 = vmatpush.msra.mxu0 0.0
      %1222 = vmatpush.msra.mxu0 %v1205
      %1223 = vmatmul.f32.gmra.mxu0 %v1202
      %v1224 = vpop.f32.mrf.mxu0
      %v1225 = vadd.f32 %v1199, %v1224
      %1226 = vdwg.mxu0
      %v1227 = vmax.f32 %v1225, 0.0
      %v1228 = vld [vmem:[%s22] sm:$0xff]
      %v1229 = vld [vmem:[%s22 + $0x8] sm:$0x1]
      %v1230 = vld [vmem:[%s23] sm:$0xff]
      %v1231 = vld [vmem:[%s23 + $0x8] sm:$0xf]
      %v1233 = vsel %vm887, %v1227, 0
      %v1236 = vsel %vm776, %v1231, 0
      %1238 = vmatpush.msra.mxu0 0.0
      %1239 = vmatpush.msra.mxu0 0.0
      %1240 = vmatpush.msra.mxu0 0.0
      %1241 = vmatpush.msra.mxu0 0.0
      %1242 = vmatpush.msra.mxu0 0.0
      %1243 = vmatpush.msra.mxu0 0.0
      %1244 = vmatpush.msra.mxu0 0.0
      %1245 = vmatpush.msra.mxu0 0.0
      %1246 = vmatpush.msra.mxu0 0.0
      %1247 = vmatpush.msra.mxu0 0.0
      %1248 = vmatpush.msra.mxu0 0.0
      %1249 = vmatpush.msra.mxu0 0.0
      %1250 = vmatpush.msra.mxu0 0.0
      %1251 = vmatpush.msra.mxu0 0.0
      %1252 = vmatpush.msra.mxu0 %v1236
      %1253 = vmatpush.msra.mxu0 %v1230
      %1254 = vmatmul.f32.gmra.mxu0 %v1233
      %v1255 = vpop.f32.mrf.mxu0
      %v1256 = vadd.f32 0.0, %v1255
      %1257 = vdwg.mxu0
      %v1258 = vld [vmem:[%s24] sm:$0x1]
      %v1260 = vperm.slane %v1258, 0
      %vm1262 = vcmask 39936
      %v1264 = vsel %vm1262, %v1228, 0
      %v1267 = vsel %vm1262, %v1229, 0
      %vm1269 = vcmask 1044480
      %v1271 = vsel %vm1269, %v1256, 0
      %1273 = vmatpush.msra.mxu0 0.0
      %1274 = vmatpush.msra.mxu0 0.0
      %1275 = vmatpush.msra.mxu0 0.0
      %1276 = vmatpush.msra.mxu0 0.0
      %1277 = vmatpush.msra.mxu0 0.0
      %1278 = vmatpush.msra.mxu0 0.0
      %1279 = vmatpush.msra.mxu0 0.0
      %1280 = vmatpush.msra.mxu0 0.0
      %1281 = vmatpush.msra.mxu0 0.0
      %1282 = vmatpush.msra.mxu0 0.0
      %1283 = vmatpush.msra.mxu0 0.0
      %1284 = vmatpush.msra.mxu0 0.0
      %1285 = vmatpush.msra.mxu0 0.0
      %1286 = vmatpush.msra.mxu0 0.0
      %1287 = vmatpush.msra.mxu0 0.0
      %1288 = vmatpush.msra.mxu0 %v1271
      %1289 = vmatmul.f32.gmra.mxu0 %v1264
      %v1290 = vpop.f32.mrf.mxu0
      %v1291 = vadd.f32 %v1260, %v1290
      %1292 = vmatmul.f32.gmra.mxu0 %v1267
      %v1293 = vpop.f32.mrf.mxu0
      %v1294 = vadd.f32 %v1260, %v1293
      %1295 = vdwg.mxu0
      %1296 = vst.msk [vmem:[%s764] sm:$0xff] %vm769, %v1291
      %vm1297 = vcmask 24576
      %1298 = vst.msk [vmem:[%s764 + $0x8] sm:$0x1] %vm1297, %v1294
      %p1299 = scmp.lt.s32.totalorder %s36, 1
      %s1300 = scalar_select %p1299, %s36, 1
      %s1301 = smul.addr %s1300, 2
      %s1302 = smul.addr %s1301, 8
      %s1303 = scalar_lea.vmem %s25, %s1302
      // Predicated region
      $region121: #{conv_autoencoder_forward.1} parent=119 // pred_check
        %p1304 = pneg %p584
      $region122: #{conv_autoencoder_forward.1} parent=119 // pred_check_branch
        %1306 = sbr.rel (%p1304) target = $region124
      $region123: #{conv_autoencoder_forward.1} parent=119 // pred_region
        _
      $region124: #{conv_autoencoder_forward.1} parent=119 // pred_fallthru
        _
    $region120: #{conv_autoencoder_forward.1} parent=5 // pred_fallthru
      _
    %p1307 = scmp.le.s32.totalorder 2, %s31
    // Predicated region
    $region125: #{conv_autoencoder_forward.1} parent=5 // pred_check
      %p1308 = pneg %p1307
    $region126: #{conv_autoencoder_forward.1} parent=5 // pred_check_branch
      %1310 = sbr.rel (%p1308) target = $region128
    $region127: #{conv_autoencoder_forward.1} parent=5 // pred_region
      %s1311 = ssub.s32 %s31, 2
      // Predicated region
      $region129: #{conv_autoencoder_forward.1} parent=127 // pred_check
        %p1312 = pneg %p590
      $region130: #{conv_autoencoder_forward.1} parent=127 // pred_check_branch
        %1314 = sbr.rel (%p1312) target = $region132
      $region131: #{conv_autoencoder_forward.1} parent=127 // pred_region
        %p1315 = scmp.lt.s32.totalorder %s37, 1
        %s1316 = scalar_select %p1315, %s37, 1
        %s1317 = smul.addr %s1316, 2
        %s1318 = smul.addr %s1317, 8
        %s1319 = scalar_lea.vmem %s25, %s1318
      $region132: #{conv_autoencoder_forward.1} parent=127 // pred_fallthru
        _
    $region128: #{conv_autoencoder_forward.1} parent=5 // pred_fallthru
      _
  $region6: #{conv_autoencoder_forward.1} parent=0 // loop_footer
    %s35 = sadd.s32 1, %s31
  $region7: #{conv_autoencoder_forward.1} parent=0 // loop_footer_branch
    %30 = sbr.rel target = $region3
  $region8: #{conv_autoencoder_forward.1} parent=0 // loop_exit
    _

</llo_original>
